<compile_context>
chip_gen: v7x
topology: tpu7x:2x2x1
jax: 0.10.0
libtpu: 0.0.40
codegen_flags: <defaults>
</compile_context>

<pallas_src>
import jax
import jax.numpy as jnp
from jax.experimental import pallas as pl
from jax.experimental.pallas import tpu as pltpu


def _fmcib_enc_kernel(x_ref, w_enc_ref, b_enc_ref, w_head_ref, o_ref,
                      z_acc, head_acc):
    # grid = (p: parallel partition of L tiles, l: L tile, k: F tile)
    l = pl.program_id(1)
    k = pl.program_id(2)
    nl = pl.num_programs(1)
    nk = pl.num_programs(2)

    # Fresh head accumulator at the start of each parallel partition.
    @pl.when(jnp.logical_and(l == 0, k == 0))
    def _():
        head_acc[...] = jnp.zeros_like(head_acc)

    # Fresh latent accumulator at the start of each L tile's K reduction.
    @pl.when(k == 0)
    def _():
        z_acc[...] = jnp.zeros_like(z_acc)

    # Encoder partial matmul: bf16 operands, f32 accumulation on the MXU.
    z_acc[...] += jnp.dot(x_ref[...], w_enc_ref[...],
                          preferred_element_type=jnp.float32)

    # K reduction for this L tile complete: bias + ReLU, then head matmul.
    # (ReLU is elementwise in L, so applying it per L tile is exact.)
    @pl.when(k == nk - 1)
    def _():
        z = jnp.maximum(z_acc[...] + b_enc_ref[...], 0.0)
        head_acc[...] += jnp.dot(z.astype(w_head_ref.dtype), w_head_ref[...],
                                 preferred_element_type=jnp.float32)

    # Last (l, k) of this partition: write this partition's partial output.
    @pl.when(jnp.logical_and(l == nl - 1, k == nk - 1))
    def _():
        o_ref[...] = head_acc[...].astype(o_ref.dtype)


def fmcib_enc_forward(x, w_enc, b_enc, w_head, b_head,
                      *, tile_l=512, tile_k=512, num_parallel=2):
    """x: (B, C, D, H, W) float32. Returns (B, num_classes) float32."""
    B = x.shape[0]
    F = int(x.size // B)
    L = w_enc.shape[1]
    C = w_head.shape[1]

    # Lane-dense head output: pad num_classes up to a multiple of 128.
    C_pad = max(128, ((C + 127) // 128) * 128)

    # Tile sizes: blocks are (8,128)-aligned or equal the full array dim.
    tk = F if F <= tile_k else tile_k
    tl = L if L <= tile_l else tile_l
    assert F % tk == 0 and L % tl == 0
    nl_total = L // tl
    P = num_parallel if (num_parallel > 0 and nl_total % num_parallel == 0) else 1
    nl = nl_total // P
    nk = F // tk

    # bf16 streams for the big operands (halves the dominant HBM traffic);
    # biases stay f32, all accumulation is f32 inside the kernel.
    x_flat = x.reshape(B, F).astype(jnp.bfloat16)
    w_enc_b = w_enc.astype(jnp.bfloat16)
    w_head_b = jnp.zeros((L, C_pad), jnp.bfloat16).at[:, :C].set(
        w_head.astype(jnp.bfloat16))
    b_enc2 = b_enc.reshape(1, L).astype(jnp.float32)

    grid = (P, nl, nk)

    grid_spec = pltpu.PrefetchScalarGridSpec(
        num_scalar_prefetch=0,
        grid=grid,
        in_specs=[
            pl.BlockSpec((B, tk), lambda p, l, k: (0, k)),            # x
            pl.BlockSpec((tk, tl), lambda p, l, k: (k, p * nl + l)),  # w_enc
            pl.BlockSpec((1, tl), lambda p, l, k: (0, p * nl + l)),   # b_enc
            pl.BlockSpec((tl, C_pad), lambda p, l, k: (p * nl + l, 0)),  # w_head
        ],
        out_specs=pl.BlockSpec((None, B, C_pad), lambda p, l, k: (p, 0, 0)),
        scratch_shapes=[
            pltpu.VMEM((B, tl), jnp.float32),      # z_acc (latent accumulator)
            pltpu.VMEM((B, C_pad), jnp.float32),   # head_acc
        ],
    )

    bytes_accessed = (x_flat.size * 2 + w_enc_b.size * 2 + b_enc2.size * 4
                      + w_head_b.size * 2 + P * B * C_pad * 4)
    cost = pl.CostEstimate(
        flops=2 * B * F * L + 2 * B * L * C_pad,
        transcendentals=0,
        bytes_accessed=bytes_accessed,
    )

    partials = pl.pallas_call(
        _fmcib_enc_kernel,
        out_shape=jax.ShapeDtypeStruct((P, B, C_pad), jnp.float32),
        grid_spec=grid_spec,
        compiler_params=pltpu.CompilerParams(
            dimension_semantics=("parallel", "arbitrary", "arbitrary"),
            vmem_limit_bytes=32 << 20,
        ),
        cost_estimate=cost,
    )(x_flat, w_enc_b, b_enc2, w_head_b)

    # Sum the per-partition partials, drop lane padding, add the head bias.
    out = partials.sum(axis=0)[:, :C] + b_head.reshape(1, C).astype(jnp.float32)
    return out


def init_params(key, in_features, latent_dim, num_classes):
    """Deterministic init. Head matches nn.Linear default (uniform +/- 1/sqrt(in))."""
    k1, k2, k3, _ = jax.random.split(key, 4)
    # Stand-in encoder projection.
    w_enc = jax.random.normal(k1, (in_features, latent_dim), jnp.float32) * 0.02
    b_enc = jnp.zeros((latent_dim,), jnp.float32)
    # Head: nn.Linear(latent_dim, num_classes); stored transposed (in, out).
    bound = 1.0 / (latent_dim ** 0.5)
    w_head = jax.random.uniform(k2, (latent_dim, num_classes), jnp.float32,
                                minval=-bound, maxval=bound)
    b_head = jax.random.uniform(k3, (num_classes,), jnp.float32,
                                minval=-bound, maxval=bound)
    return w_enc, b_enc, w_head, b_head


if __name__ == "__main__":
    key = jax.random.PRNGKey(0)
    kx, kp = jax.random.split(key)

    # Small shapes consistent with a 3D-volume encoder input (NCDHW).
    B, C_in, D, H, W = 2, 1, 8, 8, 8
    latent_dim = 4096
    num_classes = 8

    x = jax.random.normal(kx, (B, C_in, D, H, W), jnp.float32)
    w_enc, b_enc, w_head, b_head = init_params(
        kp, C_in * D * H * W, latent_dim, num_classes)

    out = fmcib_enc_forward(x, w_enc, b_enc, w_head, b_head)
    out = jax.block_until_ready(out)

    # Pure-JAX reference with the same bf16-stream / f32-accumulate numerics.
    xb = x.reshape(B, -1).astype(jnp.bfloat16)
    z_ref = jnp.maximum(
        jnp.dot(xb, w_enc.astype(jnp.bfloat16),
                preferred_element_type=jnp.float32) + b_enc, 0.0)
    ref = jnp.dot(z_ref.astype(jnp.bfloat16), w_head.astype(jnp.bfloat16),
                  preferred_element_type=jnp.float32) + b_head

    assert out.shape == (B, num_classes)
    assert jnp.allclose(out, ref, atol=2e-3, rtol=2e-3), \
        float(jnp.max(jnp.abs(out - ref)))

    print("KERNEL_OK")
</pallas_src>

<mosaic_0001>
module attributes {stable_mosaic.version = 11 : i64} {
  func.func @_fmcib_enc_kernel(%arg0: i32, %arg1: i32, %arg2: i32, %arg3: memref<2x512xbf16, #tpu.memory_space<vmem>>, %arg4: memref<512x512xbf16, #tpu.memory_space<vmem>>, %arg5: memref<1x512xf32, #tpu.memory_space<vmem>>, %arg6: memref<512x128xbf16, #tpu.memory_space<vmem>>, %arg7: memref<1x2x128xf32, #tpu.memory_space<vmem>>, %arg8: memref<2x512xf32, #tpu.memory_space<vmem>>, %arg9: memref<2x128xf32, #tpu.memory_space<vmem>>) attributes {dimension_semantics = [#tpu.dimension_semantics<parallel>, #tpu.dimension_semantics<arbitrary>, #tpu.dimension_semantics<arbitrary>], iteration_bounds = array<i64: 2, 4, 1>, scalar_prefetch = 0 : i64, scratch_operands = 2 : i64, tpu.core_type = #tpu.core_type<tc>, window_params = [{transform_indices = @transform_0, window_bounds = array<i64: 2, 512>}, {transform_indices = @transform_1, window_bounds = array<i64: 512, 512>}, {transform_indices = @transform_2, window_bounds = array<i64: 1, 512>}, {transform_indices = @transform_3, window_bounds = array<i64: 512, 128>}, {transform_indices = @transform_4, window_bounds = array<i64: 1, 2, 128>}]} {
    %c0_i32 = arith.constant 0 : i32
    %0 = arith.cmpi eq, %arg1, %c0_i32 : i32
    %c0_i32_0 = arith.constant 0 : i32
    %1 = arith.cmpi eq, %arg2, %c0_i32_0 : i32
    %2 = arith.andi %0, %1 : i1
    %3 = arith.extui %2 : i1 to i32
    %c0_i32_1 = arith.constant 0 : i32
    %4 = arith.cmpi ne, %3, %c0_i32_1 : i32
    scf.if %4 {
      %cst_15 = arith.constant 0.000000e+00 : f32
      %22 = vector.broadcast %cst_15 : f32 to vector<2x128xf32>
      %c0_16 = arith.constant 0 : index
      %c0_17 = arith.constant 0 : index
      %23 = vector.load %arg9[%c0_16, %c0_17] : memref<2x128xf32, #tpu.memory_space<vmem>>, vector<2x128xf32>
      tpu.vector_store %arg9[%c0_16, %c0_17], %22 {strides = array<i32>} : memref<2x128xf32, #tpu.memory_space<vmem>>, vector<2x128xf32>,
    } else {
    }
    %c0_i32_2 = arith.constant 0 : i32
    %5 = arith.cmpi eq, %arg2, %c0_i32_2 : i32
    %6 = arith.extui %5 : i1 to i32
    %c0_i32_3 = arith.constant 0 : i32
    %7 = arith.cmpi ne, %6, %c0_i32_3 : i32
    scf.if %7 {
      %cst_15 = arith.constant 0.000000e+00 : f32
      %22 = vector.broadcast %cst_15 : f32 to vector<2x512xf32>
      %c0_16 = arith.constant 0 : index
      %c0_17 = arith.constant 0 : index
      %23 = vector.load %arg8[%c0_16, %c0_17] : memref<2x512xf32, #tpu.memory_space<vmem>>, vector<2x512xf32>
      tpu.vector_store %arg8[%c0_16, %c0_17], %22 {strides = array<i32>} : memref<2x512xf32, #tpu.memory_space<vmem>>, vector<2x512xf32>,
    } else {
    }
    %c0 = arith.constant 0 : index
    %c0_4 = arith.constant 0 : index
    %8 = vector.load %arg8[%c0, %c0_4] : memref<2x512xf32, #tpu.memory_space<vmem>>, vector<2x512xf32>
    %c0_5 = arith.constant 0 : index
    %c0_6 = arith.constant 0 : index
    %9 = vector.load %arg3[%c0_5, %c0_6] : memref<2x512xbf16, #tpu.memory_space<vmem>>, vector<2x512xbf16>
    %c0_7 = arith.constant 0 : index
    %c0_8 = arith.constant 0 : index
    %10 = vector.load %arg4[%c0_7, %c0_8] : memref<512x512xbf16, #tpu.memory_space<vmem>>, vector<512x512xbf16>
    %cst = arith.constant dense<0.000000e+00> : vector<2x512xf32>
    %11 = tpu.matmul %9, %10, %cst {dimension_numbers = #tpu.dot_dimension_numbers<[1], [0], [0], [1], [0, 0, 1, 1], [], []>} : vector<2x512xbf16>, vector<512x512xbf16>, vector<2x512xf32> -> vector<2x512xf32>
    %12 = arith.addf %8, %11 : vector<2x512xf32>
    %c0_9 = arith.constant 0 : index
    %c0_10 = arith.constant 0 : index
    %13 = vector.load %arg8[%c0_9, %c0_10] : memref<2x512xf32, #tpu.memory_space<vmem>>, vector<2x512xf32>
    tpu.vector_store %arg8[%c0_9, %c0_10], %12 {strides = array<i32>} : memref<2x512xf32, #tpu.memory_space<vmem>>, vector<2x512xf32>,
    %c0_i32_11 = arith.constant 0 : i32
    %14 = arith.cmpi eq, %arg2, %c0_i32_11 : i32
    %15 = arith.extui %14 : i1 to i32
    %c0_i32_12 = arith.constant 0 : i32
    %16 = arith.cmpi ne, %15, %c0_i32_12 : i32
    scf.if %16 {
      %c0_15 = arith.constant 0 : index
      %c0_16 = arith.constant 0 : index
      %22 = vector.load %arg8[%c0_15, %c0_16] : memref<2x512xf32, #tpu.memory_space<vmem>>, vector<2x512xf32>
      %c0_17 = arith.constant 0 : index
      %c0_18 = arith.constant 0 : index
      %23 = vector.load %arg5[%c0_17, %c0_18] : memref<1x512xf32, #tpu.memory_space<vmem>>, vector<1x512xf32>
      %24 = vector.broadcast %23 : vector<1x512xf32> to vector<2x512xf32>
      %25 = arith.addf %22, %24 : vector<2x512xf32>
      %cst_19 = arith.constant 0.000000e+00 : f32
      %26 = vector.broadcast %cst_19 : f32 to vector<2x512xf32>
      %27 = arith.maximumf %25, %26 : vector<2x512xf32>
      %c0_20 = arith.constant 0 : index
      %c0_21 = arith.constant 0 : index
      %28 = vector.load %arg9[%c0_20, %c0_21] : memref<2x128xf32, #tpu.memory_space<vmem>>, vector<2x128xf32>
      %29 = arith.truncf %27 : vector<2x512xf32> to vector<2x512xbf16>
      %c0_22 = arith.constant 0 : index
      %c0_23 = arith.constant 0 : index
      %30 = vector.load %arg6[%c0_22, %c0_23] : memref<512x128xbf16, #tpu.memory_space<vmem>>, vector<512x128xbf16>
      %cst_24 = arith.constant dense<0.000000e+00> : vector<2x128xf32>
      %31 = tpu.matmul %29, %30, %cst_24 {dimension_numbers = #tpu.dot_dimension_numbers<[1], [0], [0], [1], [0, 0, 1, 1], [], []>} : vector<2x512xbf16>, vector<512x128xbf16>, vector<2x128xf32> -> vector<2x128xf32>
      %32 = arith.addf %28, %31 : vector<2x128xf32>
      %c0_25 = arith.constant 0 : index
      %c0_26 = arith.constant 0 : index
      %33 = vector.load %arg9[%c0_25, %c0_26] : memref<2x128xf32, #tpu.memory_space<vmem>>, vector<2x128xf32>
      tpu.vector_store %arg9[%c0_25, %c0_26], %32 {strides = array<i32>} : memref<2x128xf32, #tpu.memory_space<vmem>>, vector<2x128xf32>,
    } else {
    }
    %c3_i32 = arith.constant 3 : i32
    %17 = arith.cmpi eq, %arg1, %c3_i32 : i32
    %c0_i32_13 = arith.constant 0 : i32
    %18 = arith.cmpi eq, %arg2, %c0_i32_13 : i32
    %19 = arith.andi %17, %18 : i1
    %20 = arith.extui %19 : i1 to i32
    %c0_i32_14 = arith.constant 0 : i32
    %21 = arith.cmpi ne, %20, %c0_i32_14 : i32
    scf.if %21 {
      %c0_15 = arith.constant 0 : index
      %c0_16 = arith.constant 0 : index
      %22 = vector.load %arg9[%c0_15, %c0_16] : memref<2x128xf32, #tpu.memory_space<vmem>>, vector<2x128xf32>
      %c0_17 = arith.constant 0 : index
      %c0_18 = arith.constant 0 : index
      %c0_19 = arith.constant 0 : index
      %23 = vector.load %arg7[%c0_17, %c0_18, %c0_19] : memref<1x2x128xf32, #tpu.memory_space<vmem>>, vector<1x2x128xf32>
      %24 = vector.shape_cast %23 : vector<1x2x128xf32> to vector<2x128xf32>
      %25 = vector.shape_cast %22 : vector<2x128xf32> to vector<1x2x128xf32>
      tpu.vector_store %arg7[%c0_17, %c0_18, %c0_19], %25 {strides = array<i32>} : memref<1x2x128xf32, #tpu.memory_space<vmem>>, vector<1x2x128xf32>,
    } else {
    }
    return
  }
  func.func @transform_0(%arg0: i32, %arg1: i32, %arg2: i32) -> (i32, i32) {
    %c0_i32 = arith.constant 0 : i32
    %c0_i32_0 = arith.constant 0 : i32
    return %c0_i32, %arg2 : i32, i32
  }
  func.func @transform_1(%arg0: i32, %arg1: i32, %arg2: i32) -> (i32, i32) {
    %c4_i32 = arith.constant 4 : i32
    %0 = arith.muli %arg0, %c4_i32 : i32
    %1 = arith.addi %0, %arg1 : i32
    %c0_i32 = arith.constant 0 : i32
    return %arg2, %1 : i32, i32
  }
  func.func @transform_2(%arg0: i32, %arg1: i32, %arg2: i32) -> (i32, i32) {
    %c4_i32 = arith.constant 4 : i32
    %0 = arith.muli %arg0, %c4_i32 : i32
    %1 = arith.addi %0, %arg1 : i32
    %c0_i32 = arith.constant 0 : i32
    %c0_i32_0 = arith.constant 0 : i32
    return %c0_i32, %1 : i32, i32
  }
  func.func @transform_3(%arg0: i32, %arg1: i32, %arg2: i32) -> (i32, i32) {
    %c4_i32 = arith.constant 4 : i32
    %0 = arith.muli %arg0, %c4_i32 : i32
    %1 = arith.addi %0, %arg1 : i32
    %c0_i32 = arith.constant 0 : i32
    %c0_i32_0 = arith.constant 0 : i32
    return %1, %c0_i32 : i32, i32
  }
  func.func @transform_4(%arg0: i32, %arg1: i32, %arg2: i32) -> (i32, i32, i32) {
    %c0_i32 = arith.constant 0 : i32
    %c0_i32_0 = arith.constant 0 : i32
    %c0_i32_1 = arith.constant 0 : i32
    return %arg0, %c0_i32, %c0_i32_0 : i32, i32, i32
  }
}

</mosaic_0001>

<llo_original>
// kernel: tpu_custom_call.1
$region0: #{tpu_custom_call.1}
  #allocation0 [shape = 'u32[]', space=smem, size = 0x4, offset = 0x4, fixed_abs, tag = 'smem constant byte address 0x4 - core index']
  #allocation1 [shape = 'u32[144,128]{1,0:T(1,128)}', space=vmem, size = 0x12000, scoped, tag = 'internal scratch']
  #allocation2 [shape = 'f32[2,512]{1,0:T(2,128)}', space=vmem, size = 0x1000, scoped, tag = 'scratch operand']
  #allocation3 [shape = 'f32[2,128]{1,0:T(2,128)}', space=vmem, size = 0x400, scoped, tag = 'scratch operand']
  %s0 = inlined_call_operand.hbm [shape: bf16[2,512], index: 0, kind: input, shape index: {}]
  %s1 = inlined_call_operand.hbm [shape: bf16[512,4096], index: 1, kind: input, shape index: {}]
  %s2 = inlined_call_operand.hbm [shape: f32[1,4096], index: 2, kind: input, shape index: {}]
  %s3 = inlined_call_operand.hbm [shape: bf16[4096,128], index: 3, kind: input, shape index: {}]
  %s4 = inlined_call_operand.hbm [shape: f32[2,2,128], index: 4, kind: output, shape index: {}]
  %s5 = sld [smem:[#allocation0]]
  $region81: #{tpu_custom_call.1} parent=0
    _
  %s7 = ssub.s32 1, %s5
  %s8 = scalar_select 0, %s7, %s5
  $region1: #{tpu_custom_call.1} parent=0
    #allocation4 [shape = 'u8[2048]{0}', space=vmem, size = 0x800, scoped, tag = 'input window, operand 0, single buffered']
    #allocation5 [shape = 's32[2]{0}', space=sflag, size = 0x8, scoped, tag = 'scoped memory for tpu_custom_call.1']
    #allocation6 [shape = 's32[2]{0}', space=sflag, size = 0x8, scoped, tag = 'scoped memory for tpu_custom_call.1']
    #allocation7 [shape = 'u8[1048576]{0}', space=vmem, size = 0x100000, scoped, tag = 'input window, operand 1']
    #allocation8 [shape = 's32[2]{0}', space=sflag, size = 0x8, scoped, tag = 'scoped memory for tpu_custom_call.1']
    #allocation9 [shape = 'u8[4096]{0}', space=vmem, size = 0x1000, scoped, tag = 'input window, operand 2']
    #allocation10 [shape = 'u8[262144]{0}', space=vmem, size = 0x40000, scoped, tag = 'input window, operand 3']
    #allocation11 [shape = 's32[2]{0}', space=sflag, size = 0x8, scoped, tag = 'scoped memory for tpu_custom_call.1']
    #allocation12 [shape = 'u8[2048]{0}', space=vmem, size = 0x800, scoped, tag = 'output window, operand 0']
    %9 = vsyncpa [#allocation5], 0
    %10 = vsyncpa [#allocation8], 0
    %s11 = scalar_lea.sflag [#allocation8], 1
    %12 = vsyncpa %s11, 0
    %13 = vsyncpa [#allocation11], 0
    %s14 = scalar_lea.sflag [#allocation11], 1
    %15 = vsyncpa %s14, 0
    %16 = vsyncpa [#allocation6], 0
    %s17 = scalar_lea.sflag [#allocation6], 1
    %18 = vsyncpa %s17, 0
    loop: start=0, step=1, limit=10
    $region2: #{tpu_custom_call.1} parent=1 // loop_pre_header
      _
    $region3: #{tpu_custom_call.1} parent=1 // loop_header
      %s20 = sphi 0, %s24
      %p21 = scmp.ge.s32.totalorder %s20, 10
      %s27 = sphi 0, %s46
      %s28 = sphi 0, %s42
      %s29 = sphi 0, %s38
      %s30 = sphi 0, %s27
      %s31 = sphi 0, %s28
      %s32 = sphi 0, %s29
      %s33 = sphi 0, %s30
      %s34 = sphi 0, %s31
      %s35 = sphi 0, %s32
      %s49 = sphi 0, %s51
      %s52 = sphi 0, %s49
      %s53 = sphi 0, %s52
      %s69 = sphi 0, %s53
      %s81 = sphi 0, %s83
      %s84 = sphi 0, %s81
      %s85 = sphi 0, %s84
      %s101 = sphi 0, %s85
      %s111 = sphi 0, %s113
      %s114 = sphi 0, %s111
      %s115 = sphi 0, %s114
      %s131 = sphi 0, %s115
      %s141 = sphi 0, %s143
      %s144 = sphi 0, %s141
      %s145 = sphi 0, %s144
      %s161 = sphi 0, %s145
      %s167 = sphi 0, %s169
      %s170 = sphi 0, %s167
      %s171 = sphi 0, %s170
      %s187 = sphi 0, %s171
    $region4: #{tpu_custom_call.1} parent=1 // loop_header_branch
      %23 = sbr.rel (%p21) target = $region8
    $region5: #{tpu_custom_call.1} parent=1 // loop_body
      %s25 = ssub.s32 %s20, 1
      %s26 = ssub.s32 %s20, 2
      %s36 = sadd.s32 1, %s29
      %p37 = scmp.ge.s32.totalorder %s36, 1
      %s38 = scalar_select %p37, 0, %s36
      %s39 = sadd.s32 1, %s28
      %s40 = scalar_select %p37, %s39, %s28
      %p41 = scmp.ge.s32.totalorder %s40, 4
      %s42 = scalar_select %p41, 0, %s40
      %s43 = sadd.s32 1, %s27
      %s44 = scalar_select %p41, %s43, %s27
      %p45 = scmp.ge.s32.totalorder %s44, 2
      %s46 = scalar_select %p45, 0, %s44
      %s47 = ssub.s32 %s29, %s38
      %p48 = scmp.eq.s32.totalorder %s47, 0
      %s50 = sadd.s32 %s49, 1
      %s51 = scalar_select %p48, %s49, %s50
      %p54 = pneg %p48
      %p55 = scmp.eq.s32.totalorder %s20, 7
      %p56 = por %p54, %p55
      %p57 = scmp.ne.s32.totalorder %s49, %s52
      %p58 = scmp.eq.s32.totalorder %s20, 0
      %p59 = por %p57, %p58
      %p60 = scmp.ne.s32.totalorder %s49, %s52
      %p61 = scmp.eq.s32.totalorder %s25, 7
      %p62 = por %p60, %p61
      %p63 = scmp.ne.s32.totalorder %s52, %s53
      %p64 = scmp.eq.s32.totalorder %s25, 0
      %p65 = por %p63, %p64
      %p66 = scmp.ne.s32.totalorder %s52, %s53
      %p67 = scmp.eq.s32.totalorder %s26, 7
      %p68 = por %p66, %p67
      %p70 = scmp.ne.s32.totalorder %s53, %s69
      %p71 = scmp.eq.s32.totalorder %s26, 0
      %p72 = por %p70, %p71
      %s73 = smul.u32 %s27, 4
      %s74 = sadd.s32 %s73, %s28
      %s75 = smul.u32 %s46, 4
      %s76 = sadd.s32 %s75, %s42
      %s77 = ssub.s32 %s29, %s38
      %s78 = ssub.s32 %s74, %s76
      %s79 = sor.u32 %s77, %s78
      %p80 = scmp.eq.s32.totalorder %s79, 0
      %s82 = sadd.s32 %s81, 1
      %s83 = scalar_select %p80, %s81, %s82
      %p86 = pneg %p80
      %p87 = scmp.eq.s32.totalorder %s20, 7
      %p88 = por %p86, %p87
      %p89 = scmp.ne.s32.totalorder %s81, %s84
      %p90 = scmp.eq.s32.totalorder %s20, 0
      %p91 = por %p89, %p90
      %p92 = scmp.ne.s32.totalorder %s81, %s84
      %p93 = scmp.eq.s32.totalorder %s25, 7
      %p94 = por %p92, %p93
      %p95 = scmp.ne.s32.totalorder %s84, %s85
      %p96 = scmp.eq.s32.totalorder %s25, 0
      %p97 = por %p95, %p96
      %p98 = scmp.ne.s32.totalorder %s84, %s85
      %p99 = scmp.eq.s32.totalorder %s26, 7
      %p100 = por %p98, %p99
      %p102 = scmp.ne.s32.totalorder %s85, %s101
      %p103 = scmp.eq.s32.totalorder %s26, 0
      %p104 = por %p102, %p103
      %s105 = smul.u32 %s27, 4
      %s106 = sadd.s32 %s105, %s28
      %s107 = smul.u32 %s46, 4
      %s108 = sadd.s32 %s107, %s42
      %s109 = ssub.s32 %s106, %s108
      %p110 = scmp.eq.s32.totalorder %s109, 0
      %s112 = sadd.s32 %s111, 1
      %s113 = scalar_select %p110, %s111, %s112
      %p116 = pneg %p110
      %p117 = scmp.eq.s32.totalorder %s20, 7
      %p118 = por %p116, %p117
      %p119 = scmp.ne.s32.totalorder %s111, %s114
      %p120 = scmp.eq.s32.totalorder %s20, 0
      %p121 = por %p119, %p120
      %p122 = scmp.ne.s32.totalorder %s111, %s114
      %p123 = scmp.eq.s32.totalorder %s25, 7
      %p124 = por %p122, %p123
      %p125 = scmp.ne.s32.totalorder %s114, %s115
      %p126 = scmp.eq.s32.totalorder %s25, 0
      %p127 = por %p125, %p126
      %p128 = scmp.ne.s32.totalorder %s114, %s115
      %p129 = scmp.eq.s32.totalorder %s26, 7
      %p130 = por %p128, %p129
      %p132 = scmp.ne.s32.totalorder %s115, %s131
      %p133 = scmp.eq.s32.totalorder %s26, 0
      %p134 = por %p132, %p133
      %s135 = smul.u32 %s27, 4
      %s136 = sadd.s32 %s135, %s28
      %s137 = smul.u32 %s46, 4
      %s138 = sadd.s32 %s137, %s42
      %s139 = ssub.s32 %s136, %s138
      %p140 = scmp.eq.s32.totalorder %s139, 0
      %s142 = sadd.s32 %s141, 1
      %s143 = scalar_select %p140, %s141, %s142
      %p146 = pneg %p140
      %p147 = scmp.eq.s32.totalorder %s20, 7
      %p148 = por %p146, %p147
      %p149 = scmp.ne.s32.totalorder %s141, %s144
      %p150 = scmp.eq.s32.totalorder %s20, 0
      %p151 = por %p149, %p150
      %p152 = scmp.ne.s32.totalorder %s141, %s144
      %p153 = scmp.eq.s32.totalorder %s25, 7
      %p154 = por %p152, %p153
      %p155 = scmp.ne.s32.totalorder %s144, %s145
      %p156 = scmp.eq.s32.totalorder %s25, 0
      %p157 = por %p155, %p156
      %p158 = scmp.ne.s32.totalorder %s144, %s145
      %p159 = scmp.eq.s32.totalorder %s26, 7
      %p160 = por %p158, %p159
      %p162 = scmp.ne.s32.totalorder %s145, %s161
      %p163 = scmp.eq.s32.totalorder %s26, 0
      %p164 = por %p162, %p163
      %s165 = ssub.s32 %s27, %s46
      %p166 = scmp.eq.s32.totalorder %s165, 0
      %s168 = sadd.s32 %s167, 1
      %s169 = scalar_select %p166, %s167, %s168
      %p172 = pneg %p166
      %p173 = scmp.eq.s32.totalorder %s20, 7
      %p174 = por %p172, %p173
      %p175 = scmp.ne.s32.totalorder %s167, %s170
      %p176 = scmp.eq.s32.totalorder %s20, 0
      %p177 = por %p175, %p176
      %p178 = scmp.ne.s32.totalorder %s167, %s170
      %p179 = scmp.eq.s32.totalorder %s25, 7
      %p180 = por %p178, %p179
      %p181 = scmp.ne.s32.totalorder %s170, %s171
      %p182 = scmp.eq.s32.totalorder %s25, 0
      %p183 = por %p181, %p182
      %p184 = scmp.ne.s32.totalorder %s170, %s171
      %p185 = scmp.eq.s32.totalorder %s26, 7
      %p186 = por %p184, %p185
      %p188 = scmp.ne.s32.totalorder %s171, %s187
      %p189 = scmp.eq.s32.totalorder %s26, 0
      %p190 = por %p188, %p189
      %p191 = scmp.le.s32.totalorder 1, %s20
      %p192 = scmp.lt.s32.totalorder %s20, 9
      %p193 = pnand %p191, %p192
      %p194 = pneg %p193
      // Predicated region
      $region9: #{tpu_custom_call.1} parent=5 // pred_check
        _
      $region10: #{tpu_custom_call.1} parent=5 // pred_check_branch
        %196 = sbr.rel (%p193) target = $region12
      $region11: #{tpu_custom_call.1} parent=5 // pred_region
        %s197 = ssub.s32 %s20, 1
        // Predicated region
        $region13: #{tpu_custom_call.1} parent=11 // pred_check
          %p198 = pneg %p65
        $region14: #{tpu_custom_call.1} parent=11 // pred_check_branch
          %200 = sbr.rel (%p198) target = $region16
        $region15: #{tpu_custom_call.1} parent=11 // pred_region
          %s201 = smul.u32 4, %s32
          %s203 = ssub.s32 64, 64
          %204 = vsyncadd [#allocation5], %s203
          %s205 = smul.addr %s201, 16
          %s206 = scalar_lea.hbm %s0, %s205
          %s208 = sshll.u32 [#allocation4], 4
          %s209 = int_to_ptr.vmem [resolvable:$true] %s208
          %211 = dma.hbm_to_vmem [thread:$0]  %s206, 64, %s209, [#allocation5]
        $region16: #{tpu_custom_call.1} parent=11 // pred_fallthru
          _
      $region12: #{tpu_custom_call.1} parent=5 // pred_fallthru
        _
      %p212 = scmp.lt.s32.totalorder %s20, 8
      // Predicated region
      $region17: #{tpu_custom_call.1} parent=5 // pred_check
        %p213 = pneg %p212
      $region18: #{tpu_custom_call.1} parent=5 // pred_check_branch
        %215 = sbr.rel (%p213) target = $region20
      $region19: #{tpu_custom_call.1} parent=5 // pred_region
        // Predicated region
        $region21: #{tpu_custom_call.1} parent=19 // pred_check
          %p216 = pneg %p91
        $region22: #{tpu_custom_call.1} parent=19 // pred_check_branch
          %218 = sbr.rel (%p216) target = $region24
        $region23: #{tpu_custom_call.1} parent=19 // pred_region
          %s219 = sand.u32 %s20, 1
          %s220 = scalar_lea.sflag [#allocation8], %s219
          %s221 = sand.u32 %s81, 1
          %s222 = smul.addr %s221, 1024
          %s223 = scalar_lea.vmem [#allocation7], %s222
          %s224 = smul.u32 %s27, 4
          %s225 = sadd.s32 %s224, %s28
          %s226 = smul.u32 64, %s29
          %s227 = smul.u32 4, %s225
          %s229 = ssub.s32 16384, 16384
          %230 = vsyncadd %s220, %s229
          %s231 = smul.addr %s226, 32
          %s232 = sadd.s32 %s227, %s231
          %s233 = smul.addr %s232, 64
          %s234 = scalar_lea.hbm %s1, %s233
          %s235 = sshll.u32 %s223, 4
          %s236 = int_to_ptr.vmem [resolvable:$true] %s235
          %241 = dma.hbm_to_vmem [thread:$0]  %s234, 16384, %s236, %s220, 2048, 256, 16
        $region24: #{tpu_custom_call.1} parent=19 // pred_fallthru
          _
        // Predicated region
        $region25: #{tpu_custom_call.1} parent=19 // pred_check
          %p242 = pneg %p121
        $region26: #{tpu_custom_call.1} parent=19 // pred_check_branch
          %244 = sbr.rel (%p242) target = $region28
        $region27: #{tpu_custom_call.1} parent=19 // pred_region
          %s245 = sand.u32 %s20, 1
          %s246 = scalar_lea.sflag [#allocation8], %s245
          %s247 = sand.u32 %s111, 1
          %s248 = smul.addr %s247, 4
          %s249 = scalar_lea.vmem [#allocation9], %s248
          %s250 = smul.u32 %s27, 4
          %s251 = sadd.s32 %s250, %s28
          %s252 = smul.u32 4, %s251
          %s254 = ssub.s32 64, 64
          %255 = vsyncadd %s246, %s254
          %s256 = smul.addr %s252, 16
          %s257 = scalar_lea.hbm %s2, %s256
          %s259 = sshll.u32 %s249, 4
          %s260 = int_to_ptr.vmem [resolvable:$true] %s259
          %262 = dma.hbm_to_vmem [thread:$0]  %s257, 64, %s260, %s246
        $region28: #{tpu_custom_call.1} parent=19 // pred_fallthru
          _
        // Predicated region
        $region29: #{tpu_custom_call.1} parent=19 // pred_check
          %p263 = pneg %p151
        $region30: #{tpu_custom_call.1} parent=19 // pred_check_branch
          %265 = sbr.rel (%p263) target = $region32
        $region31: #{tpu_custom_call.1} parent=19 // pred_region
          %s266 = sand.u32 %s141, 1
          %s267 = scalar_lea.sflag [#allocation11], %s266
          %s268 = sand.u32 %s141, 1
          %s269 = smul.addr %s268, 256
          %s270 = scalar_lea.vmem [#allocation10], %s269
          %s271 = smul.u32 %s27, 4
          %s272 = sadd.s32 %s271, %s28
          %s273 = smul.u32 64, %s272
          %s275 = ssub.s32 4096, 4096
          %276 = vsyncadd %s267, %s275
          %s277 = smul.addr %s273, 64
          %s278 = scalar_lea.hbm %s3, %s277
          %s279 = sshll.u32 %s270, 4
          %s280 = int_to_ptr.vmem [resolvable:$true] %s279
          %285 = dma.hbm_to_vmem [thread:$0]  %s278, 4096, %s280, %s267, 64, 64, 4
        $region32: #{tpu_custom_call.1} parent=19 // pred_fallthru
          _
      $region20: #{tpu_custom_call.1} parent=5 // pred_fallthru
        _
      %p286 = scmp.le.s32.totalorder 1, %s20
      %p287 = scmp.lt.s32.totalorder %s20, 9
      %p288 = pnand %p286, %p287
      %p289 = pneg %p288
      // Predicated region
      $region33: #{tpu_custom_call.1} parent=5 // pred_check
        _
      $region34: #{tpu_custom_call.1} parent=5 // pred_check_branch
        %291 = sbr.rel (%p288) target = $region36
      $region35: #{tpu_custom_call.1} parent=5 // pred_region
        %s292 = ssub.s32 %s20, 1
        // Predicated region
        $region37: #{tpu_custom_call.1} parent=35 // pred_check
          %p293 = pneg %p65
        $region38: #{tpu_custom_call.1} parent=35 // pred_check_branch
          %295 = sbr.rel (%p293) target = $region40
        $region39: #{tpu_custom_call.1} parent=35 // pred_region
          %296 = dma.done [#allocation5], 64
        $region40: #{tpu_custom_call.1} parent=35 // pred_fallthru
          _
        %s297 = sand.u32 %s25, 1
        %s298 = scalar_lea.sflag [#allocation8], %s297
        %s299 = sand.u32 %s84, 1
        %s300 = smul.addr %s299, 1024
        %s301 = scalar_lea.vmem [#allocation7], %s300
        // Predicated region
        $region41: #{tpu_custom_call.1} parent=35 // pred_check
          %p302 = pneg %p97
        $region42: #{tpu_custom_call.1} parent=35 // pred_check_branch
          %304 = sbr.rel (%p302) target = $region44
        $region43: #{tpu_custom_call.1} parent=35 // pred_region
          %305 = dma.done %s298, 16384
        $region44: #{tpu_custom_call.1} parent=35 // pred_fallthru
          _
        %s306 = sand.u32 %s25, 1
        %s307 = scalar_lea.sflag [#allocation8], %s306
        %s308 = sand.u32 %s114, 1
        %s309 = smul.addr %s308, 4
        %s310 = scalar_lea.vmem [#allocation9], %s309
        // Predicated region
        $region45: #{tpu_custom_call.1} parent=35 // pred_check
          %p311 = pneg %p127
        $region46: #{tpu_custom_call.1} parent=35 // pred_check_branch
          %313 = sbr.rel (%p311) target = $region48
        $region47: #{tpu_custom_call.1} parent=35 // pred_region
          %314 = dma.done %s307, 64
        $region48: #{tpu_custom_call.1} parent=35 // pred_fallthru
          _
        %s315 = sand.u32 %s144, 1
        %s316 = scalar_lea.sflag [#allocation11], %s315
        %s317 = sand.u32 %s144, 1
        %s318 = smul.addr %s317, 256
        %s319 = scalar_lea.vmem [#allocation10], %s318
        // Predicated region
        $region49: #{tpu_custom_call.1} parent=35 // pred_check
          %p320 = pneg %p157
        $region50: #{tpu_custom_call.1} parent=35 // pred_check_branch
          %322 = sbr.rel (%p320) target = $region52
        $region51: #{tpu_custom_call.1} parent=35 // pred_region
          %323 = dma.done %s316, 4096
        $region52: #{tpu_custom_call.1} parent=35 // pred_fallthru
          _
        %p324 = pneg %p65
        %p325 = pneg %p62
        %s326 = sand.u32 %s25, 1
        %s327 = scalar_lea.sflag [#allocation8], %s326
        %s328 = sand.u32 %s84, 1
        %s329 = smul.addr %s328, 1024
        %s330 = scalar_lea.vmem [#allocation7], %s329
        %p331 = pneg %p97
        %p332 = pneg %p94
        %s333 = sand.u32 %s25, 1
        %s334 = scalar_lea.sflag [#allocation8], %s333
        %s335 = sand.u32 %s114, 1
        %s336 = smul.addr %s335, 4
        %s337 = scalar_lea.vmem [#allocation9], %s336
        %p338 = pneg %p127
        %p339 = pneg %p124
        %s340 = sand.u32 %s144, 1
        %s341 = scalar_lea.sflag [#allocation11], %s340
        %s342 = sand.u32 %s144, 1
        %s343 = smul.addr %s342, 256
        %s344 = scalar_lea.vmem [#allocation10], %s343
        %p345 = pneg %p157
        %p346 = pneg %p154
        %p347 = pneg %p183
        %p348 = pneg %p180
        %s349 = sand.u32 %s170, 1
        %s350 = scalar_lea.sflag [#allocation6], %s349
        %s351 = sand.u32 %s170, 1
        %s352 = smul.addr %s351, 2
        %s353 = scalar_lea.vmem [#allocation12], %s352
        %s354 = smul.u32 4, %s32
        %s355 = smul.u32 %s30, 4
        %s356 = sadd.s32 %s355, %s31
        %s357 = smul.u32 64, %s32
        %s358 = smul.u32 4, %s356
        %s359 = smul.u32 %s30, 4
        %s360 = sadd.s32 %s359, %s31
        %s361 = smul.u32 4, %s360
        %s362 = smul.u32 %s30, 4
        %s363 = sadd.s32 %s362, %s31
        %s364 = smul.u32 64, %s363
        %p366 = scmp.eq.s32.totalorder %s31, 0
        %p367 = scmp.eq.s32.totalorder %s32, 0
        %p368 = pnand %p366, %p367
        %p369 = pneg %p368
        // Predicated region
        $region53: #{tpu_custom_call.1} parent=35 // pred_check
          _
        $region54: #{tpu_custom_call.1} parent=35 // pred_check_branch
          %371 = sbr.rel (%p368) target = $region56
        $region55: #{tpu_custom_call.1} parent=35 // pred_region
          %372 = vst [vmem:[#allocation3] sm:$0x3] 0.0
        $region56: #{tpu_custom_call.1} parent=35 // pred_fallthru
          _
        // Predicated region
        $region57: #{tpu_custom_call.1} parent=35 // pred_check
          %p373 = pneg %p367
        $region58: #{tpu_custom_call.1} parent=35 // pred_check_branch
          %375 = sbr.rel (%p373) target = $region60
        $region59: #{tpu_custom_call.1} parent=35 // pred_region
          %376 = vst [vmem:[#allocation2] sm:$0xff] 0.0
        $region60: #{tpu_custom_call.1} parent=35 // pred_fallthru
          _
        %v377 = vld [vmem:[#allocation2] sm:$0xff]
        %v378 = vld [vmem:[#allocation4] sm:$0xf]
        %v379 = vld [vmem:[%s301] sm:$0xff]
        %v380 = vld [vmem:[%s301 + $0x8] sm:$0xff]
        %v381 = vld [vmem:[%s301 + $0x10] sm:$0xff]
        %v382 = vld [vmem:[%s301 + $0x18] sm:$0xff]
        %v383 = vld [vmem:[%s301 + $0x20] sm:$0xff]
        %v384 = vld [vmem:[%s301 + $0x28] sm:$0xff]
        %v385 = vld [vmem:[%s301 + $0x30] sm:$0xff]
        %v386 = vld [vmem:[%s301 + $0x38] sm:$0xff]
        %v387 = vld [vmem:[%s301 + $0x40] sm:$0xff]
        %v388 = vld [vmem:[%s301 + $0x48] sm:$0xff]
        %v389 = vld [vmem:[%s301 + $0x50] sm:$0xff]
        %v390 = vld [vmem:[%s301 + $0x58] sm:$0xff]
        %v391 = vld [vmem:[%s301 + $0x60] sm:$0xff]
        %v392 = vld [vmem:[%s301 + $0x68] sm:$0xff]
        %v393 = vld [vmem:[%s301 + $0x70] sm:$0xff]
        %v394 = vld [vmem:[%s301 + $0x78] sm:$0xff]
        %v395 = vld [vmem:[%s301 + $0x80] sm:$0xff]
        %v396 = vld [vmem:[%s301 + $0x88] sm:$0xff]
        %v397 = vld [vmem:[%s301 + $0x90] sm:$0xff]
        %v398 = vld [vmem:[%s301 + $0x98] sm:$0xff]
        %v399 = vld [vmem:[%s301 + $0xa0] sm:$0xff]
        %v400 = vld [vmem:[%s301 + $0xa8] sm:$0xff]
        %v401 = vld [vmem:[%s301 + $0xb0] sm:$0xff]
        %v402 = vld [vmem:[%s301 + $0xb8] sm:$0xff]
        %v403 = vld [vmem:[%s301 + $0xc0] sm:$0xff]
        %v404 = vld [vmem:[%s301 + $0xc8] sm:$0xff]
        %v405 = vld [vmem:[%s301 + $0xd0] sm:$0xff]
        %v406 = vld [vmem:[%s301 + $0xd8] sm:$0xff]
        %v407 = vld [vmem:[%s301 + $0xe0] sm:$0xff]
        %v408 = vld [vmem:[%s301 + $0xe8] sm:$0xff]
        %v409 = vld [vmem:[%s301 + $0xf0] sm:$0xff]
        %v410 = vld [vmem:[%s301 + $0xf8] sm:$0xff]
        %v411 = vld [vmem:[%s301 + $0x100] sm:$0xff]
        %v412 = vld [vmem:[%s301 + $0x108] sm:$0xff]
        %v413 = vld [vmem:[%s301 + $0x110] sm:$0xff]
        %v414 = vld [vmem:[%s301 + $0x118] sm:$0xff]
        %v415 = vld [vmem:[%s301 + $0x120] sm:$0xff]
        %v416 = vld [vmem:[%s301 + $0x128] sm:$0xff]
        %v417 = vld [vmem:[%s301 + $0x130] sm:$0xff]
        %v418 = vld [vmem:[%s301 + $0x138] sm:$0xff]
        %v419 = vld [vmem:[%s301 + $0x140] sm:$0xff]
        %v420 = vld [vmem:[%s301 + $0x148] sm:$0xff]
        %v421 = vld [vmem:[%s301 + $0x150] sm:$0xff]
        %v422 = vld [vmem:[%s301 + $0x158] sm:$0xff]
        %v423 = vld [vmem:[%s301 + $0x160] sm:$0xff]
        %v424 = vld [vmem:[%s301 + $0x168] sm:$0xff]
        %v425 = vld [vmem:[%s301 + $0x170] sm:$0xff]
        %v426 = vld [vmem:[%s301 + $0x178] sm:$0xff]
        %v427 = vld [vmem:[%s301 + $0x180] sm:$0xff]
        %v428 = vld [vmem:[%s301 + $0x188] sm:$0xff]
        %v429 = vld [vmem:[%s301 + $0x190] sm:$0xff]
        %v430 = vld [vmem:[%s301 + $0x198] sm:$0xff]
        %v431 = vld [vmem:[%s301 + $0x1a0] sm:$0xff]
        %v432 = vld [vmem:[%s301 + $0x1a8] sm:$0xff]
        %v433 = vld [vmem:[%s301 + $0x1b0] sm:$0xff]
        %v434 = vld [vmem:[%s301 + $0x1b8] sm:$0xff]
        %v435 = vld [vmem:[%s301 + $0x1c0] sm:$0xff]
        %v436 = vld [vmem:[%s301 + $0x1c8] sm:$0xff]
        %v437 = vld [vmem:[%s301 + $0x1d0] sm:$0xff]
        %v438 = vld [vmem:[%s301 + $0x1d8] sm:$0xff]
        %v439 = vld [vmem:[%s301 + $0x1e0] sm:$0xff]
        %v440 = vld [vmem:[%s301 + $0x1e8] sm:$0xff]
        %v441 = vld [vmem:[%s301 + $0x1f0] sm:$0xff]
        %v442 = vld [vmem:[%s301 + $0x1f8] sm:$0xff]
        %v443 = vld [vmem:[%s301 + $0x200] sm:$0xff]
        %v444 = vld [vmem:[%s301 + $0x208] sm:$0xff]
        %v445 = vld [vmem:[%s301 + $0x210] sm:$0xff]
        %v446 = vld [vmem:[%s301 + $0x218] sm:$0xff]
        %v447 = vld [vmem:[%s301 + $0x220] sm:$0xff]
        %v448 = vld [vmem:[%s301 + $0x228] sm:$0xff]
        %v449 = vld [vmem:[%s301 + $0x230] sm:$0xff]
        %v450 = vld [vmem:[%s301 + $0x238] sm:$0xff]
        %v451 = vld [vmem:[%s301 + $0x240] sm:$0xff]
        %v452 = vld [vmem:[%s301 + $0x248] sm:$0xff]
        %v453 = vld [vmem:[%s301 + $0x250] sm:$0xff]
        %v454 = vld [vmem:[%s301 + $0x258] sm:$0xff]
        %v455 = vld [vmem:[%s301 + $0x260] sm:$0xff]
        %v456 = vld [vmem:[%s301 + $0x268] sm:$0xff]
        %v457 = vld [vmem:[%s301 + $0x270] sm:$0xff]
        %v458 = vld [vmem:[%s301 + $0x278] sm:$0xff]
        %v459 = vld [vmem:[%s301 + $0x280] sm:$0xff]
        %v460 = vld [vmem:[%s301 + $0x288] sm:$0xff]
        %v461 = vld [vmem:[%s301 + $0x290] sm:$0xff]
        %v462 = vld [vmem:[%s301 + $0x298] sm:$0xff]
        %v463 = vld [vmem:[%s301 + $0x2a0] sm:$0xff]
        %v464 = vld [vmem:[%s301 + $0x2a8] sm:$0xff]
        %v465 = vld [vmem:[%s301 + $0x2b0] sm:$0xff]
        %v466 = vld [vmem:[%s301 + $0x2b8] sm:$0xff]
        %v467 = vld [vmem:[%s301 + $0x2c0] sm:$0xff]
        %v468 = vld [vmem:[%s301 + $0x2c8] sm:$0xff]
        %v469 = vld [vmem:[%s301 + $0x2d0] sm:$0xff]
        %v470 = vld [vmem:[%s301 + $0x2d8] sm:$0xff]
        %v471 = vld [vmem:[%s301 + $0x2e0] sm:$0xff]
        %v472 = vld [vmem:[%s301 + $0x2e8] sm:$0xff]
        %v473 = vld [vmem:[%s301 + $0x2f0] sm:$0xff]
        %v474 = vld [vmem:[%s301 + $0x2f8] sm:$0xff]
        %v475 = vld [vmem:[%s301 + $0x300] sm:$0xff]
        %v476 = vld [vmem:[%s301 + $0x308] sm:$0xff]
        %v477 = vld [vmem:[%s301 + $0x310] sm:$0xff]
        %v478 = vld [vmem:[%s301 + $0x318] sm:$0xff]
        %v479 = vld [vmem:[%s301 + $0x320] sm:$0xff]
        %v480 = vld [vmem:[%s301 + $0x328] sm:$0xff]
        %v481 = vld [vmem:[%s301 + $0x330] sm:$0xff]
        %v482 = vld [vmem:[%s301 + $0x338] sm:$0xff]
        %v483 = vld [vmem:[%s301 + $0x340] sm:$0xff]
        %v484 = vld [vmem:[%s301 + $0x348] sm:$0xff]
        %v485 = vld [vmem:[%s301 + $0x350] sm:$0xff]
        %v486 = vld [vmem:[%s301 + $0x358] sm:$0xff]
        %v487 = vld [vmem:[%s301 + $0x360] sm:$0xff]
        %v488 = vld [vmem:[%s301 + $0x368] sm:$0xff]
        %v489 = vld [vmem:[%s301 + $0x370] sm:$0xff]
        %v490 = vld [vmem:[%s301 + $0x378] sm:$0xff]
        %v491 = vld [vmem:[%s301 + $0x380] sm:$0xff]
        %v492 = vld [vmem:[%s301 + $0x388] sm:$0xff]
        %v493 = vld [vmem:[%s301 + $0x390] sm:$0xff]
        %v494 = vld [vmem:[%s301 + $0x398] sm:$0xff]
        %v495 = vld [vmem:[%s301 + $0x3a0] sm:$0xff]
        %v496 = vld [vmem:[%s301 + $0x3a8] sm:$0xff]
        %v497 = vld [vmem:[%s301 + $0x3b0] sm:$0xff]
        %v498 = vld [vmem:[%s301 + $0x3b8] sm:$0xff]
        %v499 = vld [vmem:[%s301 + $0x3c0] sm:$0xff]
        %v500 = vld [vmem:[%s301 + $0x3c8] sm:$0xff]
        %v501 = vld [vmem:[%s301 + $0x3d0] sm:$0xff]
        %v502 = vld [vmem:[%s301 + $0x3d8] sm:$0xff]
        %v503 = vld [vmem:[%s301 + $0x3e0] sm:$0xff]
        %v504 = vld [vmem:[%s301 + $0x3e8] sm:$0xff]
        %v505 = vld [vmem:[%s301 + $0x3f0] sm:$0xff]
        %v506 = vld [vmem:[%s301 + $0x3f8] sm:$0xff]
        %v509 = vunpack.c.l.s4 1966171168
        %v510 = vunpack.c.0.s8 %v509
        %v511 = vlaneseq
        %v512 = vshrl.u32 %v511, 7
        %v513 = vsub.s32 %v510, %v512
        %v514 = vrot.slane %v378, %v513
        %v515 = vcombine.high %v514, %v514
        %v517 = vunpack.c.l.s4 1966171168
        %v518 = vunpack.c.0.s8 %v517
        %v519 = vlaneseq
        %v520 = vshrl.u32 %v519, 7
        %v521 = vsub.s32 %v518, %v520
        %v522 = vrot.slane %v514, %v521
        %v524 = vunpack.c.l.s4 1966171168
        %v525 = vunpack.c.0.s8 %v524
        %v526 = vlaneseq
        %v527 = vshrl.u32 %v526, 7
        %v528 = vsub.s32 %v525, %v527
        %v529 = vrot.slane %v515, %v528
        %v530 = vcombine.high %v522, %v522
        %v531 = vcombine.high %v529, %v529
        %v664 = vunpack.c.l.b16 %v379
        %v665 = vunpack.c.h.b16 %v379
        %v666 = vunpack.c.l.b16 %v380
        %v667 = vunpack.c.h.b16 %v380
        %v668 = vunpack.c.l.b16 %v381
        %v669 = vunpack.c.h.b16 %v381
        %v670 = vunpack.c.l.b16 %v382
        %v671 = vunpack.c.h.b16 %v382
        %v672 = vunpack.c.l.b16 %v383
        %v673 = vunpack.c.h.b16 %v383
        %v674 = vunpack.c.l.b16 %v384
        %v675 = vunpack.c.h.b16 %v384
        %v676 = vunpack.c.l.b16 %v385
        %v677 = vunpack.c.h.b16 %v385
        %v678 = vunpack.c.l.b16 %v386
        %v679 = vunpack.c.h.b16 %v386
        %v680 = vunpack.c.l.b16 %v387
        %v681 = vunpack.c.h.b16 %v387
        %v682 = vunpack.c.l.b16 %v388
        %v683 = vunpack.c.h.b16 %v388
        %v684 = vunpack.c.l.b16 %v389
        %v685 = vunpack.c.h.b16 %v389
        %v686 = vunpack.c.l.b16 %v390
        %v687 = vunpack.c.h.b16 %v390
        %v688 = vunpack.c.l.b16 %v391
        %v689 = vunpack.c.h.b16 %v391
        %v690 = vunpack.c.l.b16 %v392
        %v691 = vunpack.c.h.b16 %v392
        %v692 = vunpack.c.l.b16 %v393
        %v693 = vunpack.c.h.b16 %v393
        %v694 = vunpack.c.l.b16 %v394
        %v695 = vunpack.c.h.b16 %v394
        %v696 = vunpack.c.l.b16 %v395
        %v697 = vunpack.c.h.b16 %v395
        %v698 = vunpack.c.l.b16 %v396
        %v699 = vunpack.c.h.b16 %v396
        %v700 = vunpack.c.l.b16 %v397
        %v701 = vunpack.c.h.b16 %v397
        %v702 = vunpack.c.l.b16 %v398
        %v703 = vunpack.c.h.b16 %v398
        %v704 = vunpack.c.l.b16 %v399
        %v705 = vunpack.c.h.b16 %v399
        %v706 = vunpack.c.l.b16 %v400
        %v707 = vunpack.c.h.b16 %v400
        %v708 = vunpack.c.l.b16 %v401
        %v709 = vunpack.c.h.b16 %v401
        %v710 = vunpack.c.l.b16 %v402
        %v711 = vunpack.c.h.b16 %v402
        %v712 = vunpack.c.l.b16 %v403
        %v713 = vunpack.c.h.b16 %v403
        %v714 = vunpack.c.l.b16 %v404
        %v715 = vunpack.c.h.b16 %v404
        %v716 = vunpack.c.l.b16 %v405
        %v717 = vunpack.c.h.b16 %v405
        %v718 = vunpack.c.l.b16 %v406
        %v719 = vunpack.c.h.b16 %v406
        %v720 = vunpack.c.l.b16 %v407
        %v721 = vunpack.c.h.b16 %v407
        %v722 = vunpack.c.l.b16 %v408
        %v723 = vunpack.c.h.b16 %v408
        %v724 = vunpack.c.l.b16 %v409
        %v725 = vunpack.c.h.b16 %v409
        %v726 = vunpack.c.l.b16 %v410
        %v727 = vunpack.c.h.b16 %v410
        %v728 = vunpack.c.l.b16 %v411
        %v729 = vunpack.c.h.b16 %v411
        %v730 = vunpack.c.l.b16 %v412
        %v731 = vunpack.c.h.b16 %v412
        %v732 = vunpack.c.l.b16 %v413
        %v733 = vunpack.c.h.b16 %v413
        %v734 = vunpack.c.l.b16 %v414
        %v735 = vunpack.c.h.b16 %v414
        %v736 = vunpack.c.l.b16 %v415
        %v737 = vunpack.c.h.b16 %v415
        %v738 = vunpack.c.l.b16 %v416
        %v739 = vunpack.c.h.b16 %v416
        %v740 = vunpack.c.l.b16 %v417
        %v741 = vunpack.c.h.b16 %v417
        %v742 = vunpack.c.l.b16 %v418
        %v743 = vunpack.c.h.b16 %v418
        %v744 = vunpack.c.l.b16 %v419
        %v745 = vunpack.c.h.b16 %v419
        %v746 = vunpack.c.l.b16 %v420
        %v747 = vunpack.c.h.b16 %v420
        %v748 = vunpack.c.l.b16 %v421
        %v749 = vunpack.c.h.b16 %v421
        %v750 = vunpack.c.l.b16 %v422
        %v751 = vunpack.c.h.b16 %v422
        %v752 = vunpack.c.l.b16 %v423
        %v753 = vunpack.c.h.b16 %v423
        %v754 = vunpack.c.l.b16 %v424
        %v755 = vunpack.c.h.b16 %v424
        %v756 = vunpack.c.l.b16 %v425
        %v757 = vunpack.c.h.b16 %v425
        %v758 = vunpack.c.l.b16 %v426
        %v759 = vunpack.c.h.b16 %v426
        %v760 = vunpack.c.l.b16 %v427
        %v761 = vunpack.c.h.b16 %v427
        %v762 = vunpack.c.l.b16 %v428
        %v763 = vunpack.c.h.b16 %v428
        %v764 = vunpack.c.l.b16 %v429
        %v765 = vunpack.c.h.b16 %v429
        %v766 = vunpack.c.l.b16 %v430
        %v767 = vunpack.c.h.b16 %v430
        %v768 = vunpack.c.l.b16 %v431
        %v769 = vunpack.c.h.b16 %v431
        %v770 = vunpack.c.l.b16 %v432
        %v771 = vunpack.c.h.b16 %v432
        %v772 = vunpack.c.l.b16 %v433
        %v773 = vunpack.c.h.b16 %v433
        %v774 = vunpack.c.l.b16 %v434
        %v775 = vunpack.c.h.b16 %v434
        %v776 = vunpack.c.l.b16 %v435
        %v777 = vunpack.c.h.b16 %v435
        %v778 = vunpack.c.l.b16 %v436
        %v779 = vunpack.c.h.b16 %v436
        %v780 = vunpack.c.l.b16 %v437
        %v781 = vunpack.c.h.b16 %v437
        %v782 = vunpack.c.l.b16 %v438
        %v783 = vunpack.c.h.b16 %v438
        %v784 = vunpack.c.l.b16 %v439
        %v785 = vunpack.c.h.b16 %v439
        %v786 = vunpack.c.l.b16 %v440
        %v787 = vunpack.c.h.b16 %v440
        %v788 = vunpack.c.l.b16 %v441
        %v789 = vunpack.c.h.b16 %v441
        %v790 = vunpack.c.l.b16 %v442
        %v791 = vunpack.c.h.b16 %v442
        %v792 = vunpack.c.l.b16 %v443
        %v793 = vunpack.c.h.b16 %v443
        %v794 = vunpack.c.l.b16 %v444
        %v795 = vunpack.c.h.b16 %v444
        %v796 = vunpack.c.l.b16 %v445
        %v797 = vunpack.c.h.b16 %v445
        %v798 = vunpack.c.l.b16 %v446
        %v799 = vunpack.c.h.b16 %v446
        %v800 = vunpack.c.l.b16 %v447
        %v801 = vunpack.c.h.b16 %v447
        %v802 = vunpack.c.l.b16 %v448
        %v803 = vunpack.c.h.b16 %v448
        %v804 = vunpack.c.l.b16 %v449
        %v805 = vunpack.c.h.b16 %v449
        %v806 = vunpack.c.l.b16 %v450
        %v807 = vunpack.c.h.b16 %v450
        %v808 = vunpack.c.l.b16 %v451
        %v809 = vunpack.c.h.b16 %v451
        %v810 = vunpack.c.l.b16 %v452
        %v811 = vunpack.c.h.b16 %v452
        %v812 = vunpack.c.l.b16 %v453
        %v813 = vunpack.c.h.b16 %v453
        %v814 = vunpack.c.l.b16 %v454
        %v815 = vunpack.c.h.b16 %v454
        %v816 = vunpack.c.l.b16 %v455
        %v817 = vunpack.c.h.b16 %v455
        %v818 = vunpack.c.l.b16 %v456
        %v819 = vunpack.c.h.b16 %v456
        %v820 = vunpack.c.l.b16 %v457
        %v821 = vunpack.c.h.b16 %v457
        %v822 = vunpack.c.l.b16 %v458
        %v823 = vunpack.c.h.b16 %v458
        %v824 = vunpack.c.l.b16 %v459
        %v825 = vunpack.c.h.b16 %v459
        %v826 = vunpack.c.l.b16 %v460
        %v827 = vunpack.c.h.b16 %v460
        %v828 = vunpack.c.l.b16 %v461
        %v829 = vunpack.c.h.b16 %v461
        %v830 = vunpack.c.l.b16 %v462
        %v831 = vunpack.c.h.b16 %v462
        %v832 = vunpack.c.l.b16 %v463
        %v833 = vunpack.c.h.b16 %v463
        %v834 = vunpack.c.l.b16 %v464
        %v835 = vunpack.c.h.b16 %v464
        %v836 = vunpack.c.l.b16 %v465
        %v837 = vunpack.c.h.b16 %v465
        %v838 = vunpack.c.l.b16 %v466
        %v839 = vunpack.c.h.b16 %v466
        %v840 = vunpack.c.l.b16 %v467
        %v841 = vunpack.c.h.b16 %v467
        %v842 = vunpack.c.l.b16 %v468
        %v843 = vunpack.c.h.b16 %v468
        %v844 = vunpack.c.l.b16 %v469
        %v845 = vunpack.c.h.b16 %v469
        %v846 = vunpack.c.l.b16 %v470
        %v847 = vunpack.c.h.b16 %v470
        %v848 = vunpack.c.l.b16 %v471
        %v849 = vunpack.c.h.b16 %v471
        %v850 = vunpack.c.l.b16 %v472
        %v851 = vunpack.c.h.b16 %v472
        %v852 = vunpack.c.l.b16 %v473
        %v853 = vunpack.c.h.b16 %v473
        %v854 = vunpack.c.l.b16 %v474
        %v855 = vunpack.c.h.b16 %v474
        %v856 = vunpack.c.l.b16 %v475
        %v857 = vunpack.c.h.b16 %v475
        %v858 = vunpack.c.l.b16 %v476
        %v859 = vunpack.c.h.b16 %v476
        %v860 = vunpack.c.l.b16 %v477
        %v861 = vunpack.c.h.b16 %v477
        %v862 = vunpack.c.l.b16 %v478
        %v863 = vunpack.c.h.b16 %v478
        %v864 = vunpack.c.l.b16 %v479
        %v865 = vunpack.c.h.b16 %v479
        %v866 = vunpack.c.l.b16 %v480
        %v867 = vunpack.c.h.b16 %v480
        %v868 = vunpack.c.l.b16 %v481
        %v869 = vunpack.c.h.b16 %v481
        %v870 = vunpack.c.l.b16 %v482
        %v871 = vunpack.c.h.b16 %v482
        %v872 = vunpack.c.l.b16 %v483
        %v873 = vunpack.c.h.b16 %v483
        %v874 = vunpack.c.l.b16 %v484
        %v875 = vunpack.c.h.b16 %v484
        %v876 = vunpack.c.l.b16 %v485
        %v877 = vunpack.c.h.b16 %v485
        %v878 = vunpack.c.l.b16 %v486
        %v879 = vunpack.c.h.b16 %v486
        %v880 = vunpack.c.l.b16 %v487
        %v881 = vunpack.c.h.b16 %v487
        %v882 = vunpack.c.l.b16 %v488
        %v883 = vunpack.c.h.b16 %v488
        %v884 = vunpack.c.l.b16 %v489
        %v885 = vunpack.c.h.b16 %v489
        %v886 = vunpack.c.l.b16 %v490
        %v887 = vunpack.c.h.b16 %v490
        %v888 = vunpack.c.l.b16 %v491
        %v889 = vunpack.c.h.b16 %v491
        %v890 = vunpack.c.l.b16 %v492
        %v891 = vunpack.c.h.b16 %v492
        %v892 = vunpack.c.l.b16 %v493
        %v893 = vunpack.c.h.b16 %v493
        %v894 = vunpack.c.l.b16 %v494
        %v895 = vunpack.c.h.b16 %v494
        %v896 = vunpack.c.l.b16 %v495
        %v897 = vunpack.c.h.b16 %v495
        %v898 = vunpack.c.l.b16 %v496
        %v899 = vunpack.c.h.b16 %v496
        %v900 = vunpack.c.l.b16 %v497
        %v901 = vunpack.c.h.b16 %v497
        %v902 = vunpack.c.l.b16 %v498
        %v903 = vunpack.c.h.b16 %v498
        %v904 = vunpack.c.l.b16 %v499
        %v905 = vunpack.c.h.b16 %v499
        %v906 = vunpack.c.l.b16 %v500
        %v907 = vunpack.c.h.b16 %v500
        %v908 = vunpack.c.l.b16 %v501
        %v909 = vunpack.c.h.b16 %v501
        %v910 = vunpack.c.l.b16 %v502
        %v911 = vunpack.c.h.b16 %v502
        %v912 = vunpack.c.l.b16 %v503
        %v913 = vunpack.c.h.b16 %v503
        %v914 = vunpack.c.l.b16 %v504
        %v915 = vunpack.c.h.b16 %v504
        %v916 = vunpack.c.l.b16 %v505
        %v917 = vunpack.c.h.b16 %v505
        %v918 = vunpack.c.l.b16 %v506
        %v919 = vunpack.c.h.b16 %v506
        %v920 = vpack.c.b16 %v668, %v664
        %v921 = vpack.c.b16 %v669, %v665
        %v922 = vpack.c.b16 %v670, %v666
        %v923 = vpack.c.b16 %v671, %v667
        %v924 = vpack.c.b16 %v676, %v672
        %v925 = vpack.c.b16 %v677, %v673
        %v926 = vpack.c.b16 %v678, %v674
        %v927 = vpack.c.b16 %v679, %v675
        %v928 = vpack.c.b16 %v684, %v680
        %v929 = vpack.c.b16 %v685, %v681
        %v930 = vpack.c.b16 %v686, %v682
        %v931 = vpack.c.b16 %v687, %v683
        %v932 = vpack.c.b16 %v692, %v688
        %v933 = vpack.c.b16 %v693, %v689
        %v934 = vpack.c.b16 %v694, %v690
        %v935 = vpack.c.b16 %v695, %v691
        %v936 = vpack.c.b16 %v700, %v696
        %v937 = vpack.c.b16 %v701, %v697
        %v938 = vpack.c.b16 %v702, %v698
        %v939 = vpack.c.b16 %v703, %v699
        %v940 = vpack.c.b16 %v708, %v704
        %v941 = vpack.c.b16 %v709, %v705
        %v942 = vpack.c.b16 %v710, %v706
        %v943 = vpack.c.b16 %v711, %v707
        %v944 = vpack.c.b16 %v716, %v712
        %v945 = vpack.c.b16 %v717, %v713
        %v946 = vpack.c.b16 %v718, %v714
        %v947 = vpack.c.b16 %v719, %v715
        %v948 = vpack.c.b16 %v724, %v720
        %v949 = vpack.c.b16 %v725, %v721
        %v950 = vpack.c.b16 %v726, %v722
        %v951 = vpack.c.b16 %v727, %v723
        %v952 = vpack.c.b16 %v732, %v728
        %v953 = vpack.c.b16 %v733, %v729
        %v954 = vpack.c.b16 %v734, %v730
        %v955 = vpack.c.b16 %v735, %v731
        %v956 = vpack.c.b16 %v740, %v736
        %v957 = vpack.c.b16 %v741, %v737
        %v958 = vpack.c.b16 %v742, %v738
        %v959 = vpack.c.b16 %v743, %v739
        %v960 = vpack.c.b16 %v748, %v744
        %v961 = vpack.c.b16 %v749, %v745
        %v962 = vpack.c.b16 %v750, %v746
        %v963 = vpack.c.b16 %v751, %v747
        %v964 = vpack.c.b16 %v756, %v752
        %v965 = vpack.c.b16 %v757, %v753
        %v966 = vpack.c.b16 %v758, %v754
        %v967 = vpack.c.b16 %v759, %v755
        %v968 = vpack.c.b16 %v764, %v760
        %v969 = vpack.c.b16 %v765, %v761
        %v970 = vpack.c.b16 %v766, %v762
        %v971 = vpack.c.b16 %v767, %v763
        %v972 = vpack.c.b16 %v772, %v768
        %v973 = vpack.c.b16 %v773, %v769
        %v974 = vpack.c.b16 %v774, %v770
        %v975 = vpack.c.b16 %v775, %v771
        %v976 = vpack.c.b16 %v780, %v776
        %v977 = vpack.c.b16 %v781, %v777
        %v978 = vpack.c.b16 %v782, %v778
        %v979 = vpack.c.b16 %v783, %v779
        %v980 = vpack.c.b16 %v788, %v784
        %v981 = vpack.c.b16 %v789, %v785
        %v982 = vpack.c.b16 %v790, %v786
        %v983 = vpack.c.b16 %v791, %v787
        %v984 = vpack.c.b16 %v796, %v792
        %v985 = vpack.c.b16 %v797, %v793
        %v986 = vpack.c.b16 %v798, %v794
        %v987 = vpack.c.b16 %v799, %v795
        %v988 = vpack.c.b16 %v804, %v800
        %v989 = vpack.c.b16 %v805, %v801
        %v990 = vpack.c.b16 %v806, %v802
        %v991 = vpack.c.b16 %v807, %v803
        %v992 = vpack.c.b16 %v812, %v808
        %v993 = vpack.c.b16 %v813, %v809
        %v994 = vpack.c.b16 %v814, %v810
        %v995 = vpack.c.b16 %v815, %v811
        %v996 = vpack.c.b16 %v820, %v816
        %v997 = vpack.c.b16 %v821, %v817
        %v998 = vpack.c.b16 %v822, %v818
        %v999 = vpack.c.b16 %v823, %v819
        %v1000 = vpack.c.b16 %v828, %v824
        %v1001 = vpack.c.b16 %v829, %v825
        %v1002 = vpack.c.b16 %v830, %v826
        %v1003 = vpack.c.b16 %v831, %v827
        %v1004 = vpack.c.b16 %v836, %v832
        %v1005 = vpack.c.b16 %v837, %v833
        %v1006 = vpack.c.b16 %v838, %v834
        %v1007 = vpack.c.b16 %v839, %v835
        %v1008 = vpack.c.b16 %v844, %v840
        %v1009 = vpack.c.b16 %v845, %v841
        %v1010 = vpack.c.b16 %v846, %v842
        %v1011 = vpack.c.b16 %v847, %v843
        %v1012 = vpack.c.b16 %v852, %v848
        %v1013 = vpack.c.b16 %v853, %v849
        %v1014 = vpack.c.b16 %v854, %v850
        %v1015 = vpack.c.b16 %v855, %v851
        %v1016 = vpack.c.b16 %v860, %v856
        %v1017 = vpack.c.b16 %v861, %v857
        %v1018 = vpack.c.b16 %v862, %v858
        %v1019 = vpack.c.b16 %v863, %v859
        %v1020 = vpack.c.b16 %v868, %v864
        %v1021 = vpack.c.b16 %v869, %v865
        %v1022 = vpack.c.b16 %v870, %v866
        %v1023 = vpack.c.b16 %v871, %v867
        %v1024 = vpack.c.b16 %v876, %v872
        %v1025 = vpack.c.b16 %v877, %v873
        %v1026 = vpack.c.b16 %v878, %v874
        %v1027 = vpack.c.b16 %v879, %v875
        %v1028 = vpack.c.b16 %v884, %v880
        %v1029 = vpack.c.b16 %v885, %v881
        %v1030 = vpack.c.b16 %v886, %v882
        %v1031 = vpack.c.b16 %v887, %v883
        %v1032 = vpack.c.b16 %v892, %v888
        %v1033 = vpack.c.b16 %v893, %v889
        %v1034 = vpack.c.b16 %v894, %v890
        %v1035 = vpack.c.b16 %v895, %v891
        %v1036 = vpack.c.b16 %v900, %v896
        %v1037 = vpack.c.b16 %v901, %v897
        %v1038 = vpack.c.b16 %v902, %v898
        %v1039 = vpack.c.b16 %v903, %v899
        %v1040 = vpack.c.b16 %v908, %v904
        %v1041 = vpack.c.b16 %v909, %v905
        %v1042 = vpack.c.b16 %v910, %v906
        %v1043 = vpack.c.b16 %v911, %v907
        %v1044 = vpack.c.b16 %v916, %v912
        %v1045 = vpack.c.b16 %v917, %v913
        %v1046 = vpack.c.b16 %v918, %v914
        %v1047 = vpack.c.b16 %v919, %v915
        %1176 = vmatprep.subr.bf16.mxu0 %v921
        %1177 = vmatpush1.bf16.msra.mxu0 %v920
        %1178 = vmatprep.subr.bf16.mxu0 %v925
        %1179 = vmatpush1.bf16.msra.mxu0 %v924
        %1180 = vmatprep.subr.bf16.mxu0 %v929
        %1181 = vmatpush1.bf16.msra.mxu0 %v928
        %1182 = vmatprep.subr.bf16.mxu0 %v933
        %1183 = vmatpush1.bf16.msra.mxu0 %v932
        %1184 = vmatprep.subr.bf16.mxu0 %v937
        %1185 = vmatpush1.bf16.msra.mxu0 %v936
        %1186 = vmatprep.subr.bf16.mxu0 %v941
        %1187 = vmatpush1.bf16.msra.mxu0 %v940
        %1188 = vmatprep.subr.bf16.mxu0 %v945
        %1189 = vmatpush1.bf16.msra.mxu0 %v944
        %1190 = vmatprep.subr.bf16.mxu0 %v949
        %1191 = vmatpush1.bf16.msra.mxu0 %v948
        %1192 = vmatprep.subr.bf16.mxu0 %v953
        %1193 = vmatpush1.bf16.msra.mxu0 %v952
        %1194 = vmatprep.subr.bf16.mxu0 %v957
        %1195 = vmatpush1.bf16.msra.mxu0 %v956
        %1196 = vmatprep.subr.bf16.mxu0 %v961
        %1197 = vmatpush1.bf16.msra.mxu0 %v960
        %1198 = vmatprep.subr.bf16.mxu0 %v965
        %1199 = vmatpush1.bf16.msra.mxu0 %v964
        %1200 = vmatprep.subr.bf16.mxu0 %v969
        %1201 = vmatpush1.bf16.msra.mxu0 %v968
        %1202 = vmatprep.subr.bf16.mxu0 %v973
        %1203 = vmatpush1.bf16.msra.mxu0 %v972
        %1204 = vmatprep.subr.bf16.mxu0 %v977
        %1205 = vmatpush1.bf16.msra.mxu0 %v976
        %1206 = vmatprep.subr.bf16.mxu0 %v981
        %1207 = vmatpush1.bf16.msra.mxu0 %v980
        %1208 = vmatprep.mubr.bf16.mxu0 %v529
        %1209 = vmatmul.mubr.bf16.gmra.mrb[0].mxu0 %v522
        %v1210 = vpop.f32.mrb[0].mxu0
        %v1211 = vadd.f32 0.0, %v1210
        %v1212 = vpop.f32.mrb[0].mxu0
        %v1213 = vadd.f32 0.0, %v1212
        %v1214 = vpop.f32.mrb[0].mxu0
        %v1215 = vpop.f32.mrb[0].mxu0
        %1216 = vdwg.mxu0
        %1217 = vmatprep.subr.bf16.mxu0 %v985
        %1218 = vmatpush1.bf16.msra.mxu0 %v984
        %1219 = vmatprep.subr.bf16.mxu0 %v989
        %1220 = vmatpush1.bf16.msra.mxu0 %v988
        %1221 = vmatprep.subr.bf16.mxu0 %v993
        %1222 = vmatpush1.bf16.msra.mxu0 %v992
        %1223 = vmatprep.subr.bf16.mxu0 %v997
        %1224 = vmatpush1.bf16.msra.mxu0 %v996
        %1225 = vmatprep.subr.bf16.mxu0 %v1001
        %1226 = vmatpush1.bf16.msra.mxu0 %v1000
        %1227 = vmatprep.subr.bf16.mxu0 %v1005
        %1228 = vmatpush1.bf16.msra.mxu0 %v1004
        %1229 = vmatprep.subr.bf16.mxu0 %v1009
        %1230 = vmatpush1.bf16.msra.mxu0 %v1008
        %1231 = vmatprep.subr.bf16.mxu0 %v1013
        %1232 = vmatpush1.bf16.msra.mxu0 %v1012
        %1233 = vmatprep.subr.bf16.mxu0 %v1017
        %1234 = vmatpush1.bf16.msra.mxu0 %v1016
        %1235 = vmatprep.subr.bf16.mxu0 %v1021
        %1236 = vmatpush1.bf16.msra.mxu0 %v1020
        %1237 = vmatprep.subr.bf16.mxu0 %v1025
        %1238 = vmatpush1.bf16.msra.mxu0 %v1024
        %1239 = vmatprep.subr.bf16.mxu0 %v1029
        %1240 = vmatpush1.bf16.msra.mxu0 %v1028
        %1241 = vmatprep.subr.bf16.mxu0 %v1033
        %1242 = vmatpush1.bf16.msra.mxu0 %v1032
        %1243 = vmatprep.subr.bf16.mxu0 %v1037
        %1244 = vmatpush1.bf16.msra.mxu0 %v1036
        %1245 = vmatprep.subr.bf16.mxu0 %v1041
        %1246 = vmatpush1.bf16.msra.mxu0 %v1040
        %1247 = vmatprep.subr.bf16.mxu0 %v1045
        %1248 = vmatpush1.bf16.msra.mxu0 %v1044
        %1249 = vmatprep.mubr.bf16.mxu0 %v531
        %1250 = vmatmul.mubr.bf16.gmra.mrb[0].mxu0 %v530
        %v1251 = vpop.f32.mrb[0].mxu0
        %v1252 = vadd.f32 %v1211, %v1251
        %v1253 = vpop.f32.mrb[0].mxu0
        %v1254 = vadd.f32 %v1213, %v1253
        %v1255 = vpop.f32.mrb[0].mxu0
        %v1256 = vpop.f32.mrb[0].mxu0
        %1257 = vdwg.mxu0
        %1258 = vmatprep.subr.bf16.mxu0 %v923
        %1259 = vmatpush1.bf16.msra.mxu0 %v922
        %1260 = vmatprep.subr.bf16.mxu0 %v927
        %1261 = vmatpush1.bf16.msra.mxu0 %v926
        %1262 = vmatprep.subr.bf16.mxu0 %v931
        %1263 = vmatpush1.bf16.msra.mxu0 %v930
        %1264 = vmatprep.subr.bf16.mxu0 %v935
        %1265 = vmatpush1.bf16.msra.mxu0 %v934
        %1266 = vmatprep.subr.bf16.mxu0 %v939
        %1267 = vmatpush1.bf16.msra.mxu0 %v938
        %1268 = vmatprep.subr.bf16.mxu0 %v943
        %1269 = vmatpush1.bf16.msra.mxu0 %v942
        %1270 = vmatprep.subr.bf16.mxu0 %v947
        %1271 = vmatpush1.bf16.msra.mxu0 %v946
        %1272 = vmatprep.subr.bf16.mxu0 %v951
        %1273 = vmatpush1.bf16.msra.mxu0 %v950
        %1274 = vmatprep.subr.bf16.mxu0 %v955
        %1275 = vmatpush1.bf16.msra.mxu0 %v954
        %1276 = vmatprep.subr.bf16.mxu0 %v959
        %1277 = vmatpush1.bf16.msra.mxu0 %v958
        %1278 = vmatprep.subr.bf16.mxu0 %v963
        %1279 = vmatpush1.bf16.msra.mxu0 %v962
        %1280 = vmatprep.subr.bf16.mxu0 %v967
        %1281 = vmatpush1.bf16.msra.mxu0 %v966
        %1282 = vmatprep.subr.bf16.mxu0 %v971
        %1283 = vmatpush1.bf16.msra.mxu0 %v970
        %1284 = vmatprep.subr.bf16.mxu0 %v975
        %1285 = vmatpush1.bf16.msra.mxu0 %v974
        %1286 = vmatprep.subr.bf16.mxu0 %v979
        %1287 = vmatpush1.bf16.msra.mxu0 %v978
        %1288 = vmatprep.subr.bf16.mxu0 %v983
        %1289 = vmatpush1.bf16.msra.mxu0 %v982
        %1290 = vmatprep.mubr.bf16.mxu0 %v529
        %1291 = vmatmul.mubr.bf16.gmra.mrb[0].mxu0 %v522
        %v1292 = vpop.f32.mrb[0].mxu0
        %v1293 = vadd.f32 0.0, %v1292
        %v1294 = vpop.f32.mrb[0].mxu0
        %v1295 = vadd.f32 0.0, %v1294
        %v1296 = vpop.f32.mrb[0].mxu0
        %v1297 = vpop.f32.mrb[0].mxu0
        %1298 = vdwg.mxu0
        %1299 = vmatprep.subr.bf16.mxu0 %v987
        %1300 = vmatpush1.bf16.msra.mxu0 %v986
        %1301 = vmatprep.subr.bf16.mxu0 %v991
        %1302 = vmatpush1.bf16.msra.mxu0 %v990
        %1303 = vmatprep.subr.bf16.mxu0 %v995
        %1304 = vmatpush1.bf16.msra.mxu0 %v994
        %1305 = vmatprep.subr.bf16.mxu0 %v999
        %1306 = vmatpush1.bf16.msra.mxu0 %v998
        %1307 = vmatprep.subr.bf16.mxu0 %v1003
        %1308 = vmatpush1.bf16.msra.mxu0 %v1002
        %1309 = vmatprep.subr.bf16.mxu0 %v1007
        %1310 = vmatpush1.bf16.msra.mxu0 %v1006
        %1311 = vmatprep.subr.bf16.mxu0 %v1011
        %1312 = vmatpush1.bf16.msra.mxu0 %v1010
        %1313 = vmatprep.subr.bf16.mxu0 %v1015
        %1314 = vmatpush1.bf16.msra.mxu0 %v1014
        %1315 = vmatprep.subr.bf16.mxu0 %v1019
        %1316 = vmatpush1.bf16.msra.mxu0 %v1018
        %1317 = vmatprep.subr.bf16.mxu0 %v1023
        %1318 = vmatpush1.bf16.msra.mxu0 %v1022
        %1319 = vmatprep.subr.bf16.mxu0 %v1027
        %1320 = vmatpush1.bf16.msra.mxu0 %v1026
        %1321 = vmatprep.subr.bf16.mxu0 %v1031
        %1322 = vmatpush1.bf16.msra.mxu0 %v1030
        %1323 = vmatprep.subr.bf16.mxu0 %v1035
        %1324 = vmatpush1.bf16.msra.mxu0 %v1034
        %1325 = vmatprep.subr.bf16.mxu0 %v1039
        %1326 = vmatpush1.bf16.msra.mxu0 %v1038
        %1327 = vmatprep.subr.bf16.mxu0 %v1043
        %1328 = vmatpush1.bf16.msra.mxu0 %v1042
        %1329 = vmatprep.subr.bf16.mxu0 %v1047
        %1330 = vmatpush1.bf16.msra.mxu0 %v1046
        %1331 = vmatprep.mubr.bf16.mxu0 %v531
        %1332 = vmatmul.mubr.bf16.gmra.mrb[0].mxu0 %v530
        %v1333 = vpop.f32.mrb[0].mxu0
        %v1334 = vadd.f32 %v1293, %v1333
        %v1335 = vpop.f32.mrb[0].mxu0
        %v1336 = vadd.f32 %v1295, %v1335
        %v1337 = vpop.f32.mrb[0].mxu0
        %v1338 = vpop.f32.mrb[0].mxu0
        %1339 = vdwg.mxu0
        %v1344 = vcombine.low %v1252, %v1254
        %v1345 = vcombine.low %v1334, %v1336
        %v1347 = vunpack.c.l.s4 1983009808
        %v1348 = vunpack.c.0.s8 %v1347
        %v1349 = vlaneseq
        %v1350 = vshrl.u32 %v1349, 7
        %v1351 = vsub.s32 %v1348, %v1350
        %v1352 = vrot.slane %v1344, %v1351
        %v1354 = vunpack.c.l.s4 1983009808
        %v1355 = vunpack.c.0.s8 %v1354
        %v1356 = vlaneseq
        %v1357 = vshrl.u32 %v1356, 7
        %v1358 = vsub.s32 %v1355, %v1357
        %v1359 = vrot.slane %v1345, %v1358
        %v1360 = vcombine.low %v1352, %v1359
        %v1362 = vadd.f32 %v377, %v1360
        %1363 = vst [vmem:[#allocation2] sm:$0xff] %v1362
        // Predicated region
        $region61: #{tpu_custom_call.1} parent=35 // pred_check
          %p1364 = pneg %p367
        $region62: #{tpu_custom_call.1} parent=35 // pred_check_branch
          %1366 = sbr.rel (%p1364) target = $region64
        $region63: #{tpu_custom_call.1} parent=35 // pred_region
          %v1367 = vld [vmem:[#allocation2] sm:$0xff]
          %v1368 = vld [vmem:[%s310] sm:$0xf]
          %v1370 = vlaneseq
          %v1371 = vshrl.u32 %v1370, 7
          %v1372 = vsub.s32 0, %v1371
          %v1373 = vrot.slane %v1368, %v1372
          %v1374 = vlaneseq
          %v1375 = vshrl.u32 %v1374, 7
          %v1376 = vsub.s32 1, %v1375
          %v1377 = vrot.slane %v1368, %v1376
          %v1378 = vlaneseq
          %v1379 = vshrl.u32 %v1378, 7
          %v1380 = vsub.s32 2, %v1379
          %v1381 = vrot.slane %v1368, %v1380
          %v1382 = vlaneseq
          %v1383 = vshrl.u32 %v1382, 7
          %v1384 = vsub.s32 3, %v1383
          %v1385 = vrot.slane %v1368, %v1384
          %v1386 = vcombine.low %v1373, %v1377
          %v1387 = vcombine.low %v1381, %v1385
          %v1389 = vunpack.c.l.s4 1983009808
          %v1390 = vunpack.c.0.s8 %v1389
          %v1391 = vlaneseq
          %v1392 = vshrl.u32 %v1391, 7
          %v1393 = vsub.s32 %v1390, %v1392
          %v1394 = vrot.slane %v1386, %v1393
          %v1396 = vunpack.c.l.s4 1983009808
          %v1397 = vunpack.c.0.s8 %v1396
          %v1398 = vlaneseq
          %v1399 = vshrl.u32 %v1398, 7
          %v1400 = vsub.s32 %v1397, %v1399
          %v1401 = vrot.slane %v1387, %v1400
          %v1402 = vcombine.low %v1394, %v1401
          %v1404 = vadd.f32 %v1367, %v1402
          %v1405 = vmax.f32 %v1404, 0.0
          %v1406 = vld [vmem:[#allocation3] sm:$0x3]
          %v1408 = vcombine.high %v1405, %v1405
          %v1410 = vunpack.c.l.s4 1983009808
          %v1411 = vunpack.c.0.s8 %v1410
          %v1412 = vlaneseq
          %v1413 = vshrl.u32 %v1412, 7
          %v1414 = vsub.s32 %v1411, %v1413
          %v1415 = vrot.slane %v1405, %v1414
          %v1417 = vunpack.c.l.s4 1983009808
          %v1418 = vunpack.c.0.s8 %v1417
          %v1419 = vlaneseq
          %v1420 = vshrl.u32 %v1419, 7
          %v1421 = vsub.s32 %v1418, %v1420
          %v1422 = vrot.slane %v1408, %v1421
          %v1423 = vcombine.high %v1415, %v1415
          %v1424 = vcombine.high %v1422, %v1422
          %v1429 = vpack.c.bf16 %v1415, %v1415
          %v1430 = vpack.c.bf16 %v1423, %v1423
          %v1431 = vpack.c.bf16 %v1422, %v1422
          %v1432 = vpack.c.bf16 %v1424, %v1424
          %v1433 = vld [vmem:[%s319] sm:$0xf]
          %v1434 = vld [vmem:[%s319 + $0x4] sm:$0xf]
          %v1435 = vld [vmem:[%s319 + $0x8] sm:$0xf]
          %v1436 = vld [vmem:[%s319 + $0xc] sm:$0xf]
          %v1437 = vld [vmem:[%s319 + $0x10] sm:$0xf]
          %v1438 = vld [vmem:[%s319 + $0x14] sm:$0xf]
          %v1439 = vld [vmem:[%s319 + $0x18] sm:$0xf]
          %v1440 = vld [vmem:[%s319 + $0x1c] sm:$0xf]
          %v1441 = vld [vmem:[%s319 + $0x20] sm:$0xf]
          %v1442 = vld [vmem:[%s319 + $0x24] sm:$0xf]
          %v1443 = vld [vmem:[%s319 + $0x28] sm:$0xf]
          %v1444 = vld [vmem:[%s319 + $0x2c] sm:$0xf]
          %v1445 = vld [vmem:[%s319 + $0x30] sm:$0xf]
          %v1446 = vld [vmem:[%s319 + $0x34] sm:$0xf]
          %v1447 = vld [vmem:[%s319 + $0x38] sm:$0xf]
          %v1448 = vld [vmem:[%s319 + $0x3c] sm:$0xf]
          %v1449 = vld [vmem:[%s319 + $0x40] sm:$0xf]
          %v1450 = vld [vmem:[%s319 + $0x44] sm:$0xf]
          %v1451 = vld [vmem:[%s319 + $0x48] sm:$0xf]
          %v1452 = vld [vmem:[%s319 + $0x4c] sm:$0xf]
          %v1453 = vld [vmem:[%s319 + $0x50] sm:$0xf]
          %v1454 = vld [vmem:[%s319 + $0x54] sm:$0xf]
          %v1455 = vld [vmem:[%s319 + $0x58] sm:$0xf]
          %v1456 = vld [vmem:[%s319 + $0x5c] sm:$0xf]
          %v1457 = vld [vmem:[%s319 + $0x60] sm:$0xf]
          %v1458 = vld [vmem:[%s319 + $0x64] sm:$0xf]
          %v1459 = vld [vmem:[%s319 + $0x68] sm:$0xf]
          %v1460 = vld [vmem:[%s319 + $0x6c] sm:$0xf]
          %v1461 = vld [vmem:[%s319 + $0x70] sm:$0xf]
          %v1462 = vld [vmem:[%s319 + $0x74] sm:$0xf]
          %v1463 = vld [vmem:[%s319 + $0x78] sm:$0xf]
          %v1464 = vld [vmem:[%s319 + $0x7c] sm:$0xf]
          %v1465 = vld [vmem:[%s319 + $0x80] sm:$0xf]
          %v1466 = vld [vmem:[%s319 + $0x84] sm:$0xf]
          %v1467 = vld [vmem:[%s319 + $0x88] sm:$0xf]
          %v1468 = vld [vmem:[%s319 + $0x8c] sm:$0xf]
          %v1469 = vld [vmem:[%s319 + $0x90] sm:$0xf]
          %v1470 = vld [vmem:[%s319 + $0x94] sm:$0xf]
          %v1471 = vld [vmem:[%s319 + $0x98] sm:$0xf]
          %v1472 = vld [vmem:[%s319 + $0x9c] sm:$0xf]
          %v1473 = vld [vmem:[%s319 + $0xa0] sm:$0xf]
          %v1474 = vld [vmem:[%s319 + $0xa4] sm:$0xf]
          %v1475 = vld [vmem:[%s319 + $0xa8] sm:$0xf]
          %v1476 = vld [vmem:[%s319 + $0xac] sm:$0xf]
          %v1477 = vld [vmem:[%s319 + $0xb0] sm:$0xf]
          %v1478 = vld [vmem:[%s319 + $0xb4] sm:$0xf]
          %v1479 = vld [vmem:[%s319 + $0xb8] sm:$0xf]
          %v1480 = vld [vmem:[%s319 + $0xbc] sm:$0xf]
          %v1481 = vld [vmem:[%s319 + $0xc0] sm:$0xf]
          %v1482 = vld [vmem:[%s319 + $0xc4] sm:$0xf]
          %v1483 = vld [vmem:[%s319 + $0xc8] sm:$0xf]
          %v1484 = vld [vmem:[%s319 + $0xcc] sm:$0xf]
          %v1485 = vld [vmem:[%s319 + $0xd0] sm:$0xf]
          %v1486 = vld [vmem:[%s319 + $0xd4] sm:$0xf]
          %v1487 = vld [vmem:[%s319 + $0xd8] sm:$0xf]
          %v1488 = vld [vmem:[%s319 + $0xdc] sm:$0xf]
          %v1489 = vld [vmem:[%s319 + $0xe0] sm:$0xf]
          %v1490 = vld [vmem:[%s319 + $0xe4] sm:$0xf]
          %v1491 = vld [vmem:[%s319 + $0xe8] sm:$0xf]
          %v1492 = vld [vmem:[%s319 + $0xec] sm:$0xf]
          %v1493 = vld [vmem:[%s319 + $0xf0] sm:$0xf]
          %v1494 = vld [vmem:[%s319 + $0xf4] sm:$0xf]
          %v1495 = vld [vmem:[%s319 + $0xf8] sm:$0xf]
          %v1496 = vld [vmem:[%s319 + $0xfc] sm:$0xf]
          %v1561 = vunpack.c.l.b16 %v1433
          %v1562 = vunpack.c.l.b16 %v1434
          %v1563 = vunpack.c.l.b16 %v1435
          %v1564 = vunpack.c.l.b16 %v1436
          %v1565 = vunpack.c.l.b16 %v1437
          %v1566 = vunpack.c.l.b16 %v1438
          %v1567 = vunpack.c.l.b16 %v1439
          %v1568 = vunpack.c.l.b16 %v1440
          %v1569 = vunpack.c.l.b16 %v1441
          %v1570 = vunpack.c.l.b16 %v1442
          %v1571 = vunpack.c.l.b16 %v1443
          %v1572 = vunpack.c.l.b16 %v1444
          %v1573 = vunpack.c.l.b16 %v1445
          %v1574 = vunpack.c.l.b16 %v1446
          %v1575 = vunpack.c.l.b16 %v1447
          %v1576 = vunpack.c.l.b16 %v1448
          %v1577 = vunpack.c.l.b16 %v1449
          %v1578 = vunpack.c.l.b16 %v1450
          %v1579 = vunpack.c.l.b16 %v1451
          %v1580 = vunpack.c.l.b16 %v1452
          %v1581 = vunpack.c.l.b16 %v1453
          %v1582 = vunpack.c.l.b16 %v1454
          %v1583 = vunpack.c.l.b16 %v1455
          %v1584 = vunpack.c.l.b16 %v1456
          %v1585 = vunpack.c.l.b16 %v1457
          %v1586 = vunpack.c.l.b16 %v1458
          %v1587 = vunpack.c.l.b16 %v1459
          %v1588 = vunpack.c.l.b16 %v1460
          %v1589 = vunpack.c.l.b16 %v1461
          %v1590 = vunpack.c.l.b16 %v1462
          %v1591 = vunpack.c.l.b16 %v1463
          %v1592 = vunpack.c.l.b16 %v1464
          %v1593 = vunpack.c.l.b16 %v1465
          %v1594 = vunpack.c.l.b16 %v1466
          %v1595 = vunpack.c.l.b16 %v1467
          %v1596 = vunpack.c.l.b16 %v1468
          %v1597 = vunpack.c.l.b16 %v1469
          %v1598 = vunpack.c.l.b16 %v1470
          %v1599 = vunpack.c.l.b16 %v1471
          %v1600 = vunpack.c.l.b16 %v1472
          %v1601 = vunpack.c.l.b16 %v1473
          %v1602 = vunpack.c.l.b16 %v1474
          %v1603 = vunpack.c.l.b16 %v1475
          %v1604 = vunpack.c.l.b16 %v1476
          %v1605 = vunpack.c.l.b16 %v1477
          %v1606 = vunpack.c.l.b16 %v1478
          %v1607 = vunpack.c.l.b16 %v1479
          %v1608 = vunpack.c.l.b16 %v1480
          %v1609 = vunpack.c.l.b16 %v1481
          %v1610 = vunpack.c.l.b16 %v1482
          %v1611 = vunpack.c.l.b16 %v1483
          %v1612 = vunpack.c.l.b16 %v1484
          %v1613 = vunpack.c.l.b16 %v1485
          %v1614 = vunpack.c.l.b16 %v1486
          %v1615 = vunpack.c.l.b16 %v1487
          %v1616 = vunpack.c.l.b16 %v1488
          %v1617 = vunpack.c.l.b16 %v1489
          %v1618 = vunpack.c.l.b16 %v1490
          %v1619 = vunpack.c.l.b16 %v1491
          %v1620 = vunpack.c.l.b16 %v1492
          %v1621 = vunpack.c.l.b16 %v1493
          %v1622 = vunpack.c.l.b16 %v1494
          %v1623 = vunpack.c.l.b16 %v1495
          %v1624 = vunpack.c.l.b16 %v1496
          %v1625 = vpack.c.b16 %v1562, %v1561
          %v1626 = vpack.c.b16 %v1564, %v1563
          %v1627 = vpack.c.b16 %v1566, %v1565
          %v1628 = vpack.c.b16 %v1568, %v1567
          %v1629 = vpack.c.b16 %v1570, %v1569
          %v1630 = vpack.c.b16 %v1572, %v1571
          %v1631 = vpack.c.b16 %v1574, %v1573
          %v1632 = vpack.c.b16 %v1576, %v1575
          %v1633 = vpack.c.b16 %v1578, %v1577
          %v1634 = vpack.c.b16 %v1580, %v1579
          %v1635 = vpack.c.b16 %v1582, %v1581
          %v1636 = vpack.c.b16 %v1584, %v1583
          %v1637 = vpack.c.b16 %v1586, %v1585
          %v1638 = vpack.c.b16 %v1588, %v1587
          %v1639 = vpack.c.b16 %v1590, %v1589
          %v1640 = vpack.c.b16 %v1592, %v1591
          %v1641 = vpack.c.b16 %v1594, %v1593
          %v1642 = vpack.c.b16 %v1596, %v1595
          %v1643 = vpack.c.b16 %v1598, %v1597
          %v1644 = vpack.c.b16 %v1600, %v1599
          %v1645 = vpack.c.b16 %v1602, %v1601
          %v1646 = vpack.c.b16 %v1604, %v1603
          %v1647 = vpack.c.b16 %v1606, %v1605
          %v1648 = vpack.c.b16 %v1608, %v1607
          %v1649 = vpack.c.b16 %v1610, %v1609
          %v1650 = vpack.c.b16 %v1612, %v1611
          %v1651 = vpack.c.b16 %v1614, %v1613
          %v1652 = vpack.c.b16 %v1616, %v1615
          %v1653 = vpack.c.b16 %v1618, %v1617
          %v1654 = vpack.c.b16 %v1620, %v1619
          %v1655 = vpack.c.b16 %v1622, %v1621
          %v1656 = vpack.c.b16 %v1624, %v1623
          %1689 = vmatprep.subr.bf16.mxu0 0
          %1690 = vmatpush1.bf16.msra.mxu0 %v1625
          %1691 = vmatprep.subr.bf16.mxu0 0
          %1692 = vmatpush1.bf16.msra.mxu0 %v1626
          %1693 = vmatprep.subr.bf16.mxu0 0
          %1694 = vmatpush1.bf16.msra.mxu0 %v1627
          %1695 = vmatprep.subr.bf16.mxu0 0
          %1696 = vmatpush1.bf16.msra.mxu0 %v1628
          %1697 = vmatprep.subr.bf16.mxu0 0
          %1698 = vmatpush1.bf16.msra.mxu0 %v1629
          %1699 = vmatprep.subr.bf16.mxu0 0
          %1700 = vmatpush1.bf16.msra.mxu0 %v1630
          %1701 = vmatprep.subr.bf16.mxu0 0
          %1702 = vmatpush1.bf16.msra.mxu0 %v1631
          %1703 = vmatprep.subr.bf16.mxu0 0
          %1704 = vmatpush1.bf16.msra.mxu0 %v1632
          %1705 = vmatprep.subr.bf16.mxu0 0
          %1706 = vmatpush1.bf16.msra.mxu0 %v1633
          %1707 = vmatprep.subr.bf16.mxu0 0
          %1708 = vmatpush1.bf16.msra.mxu0 %v1634
          %1709 = vmatprep.subr.bf16.mxu0 0
          %1710 = vmatpush1.bf16.msra.mxu0 %v1635
          %1711 = vmatprep.subr.bf16.mxu0 0
          %1712 = vmatpush1.bf16.msra.mxu0 %v1636
          %1713 = vmatprep.subr.bf16.mxu0 0
          %1714 = vmatpush1.bf16.msra.mxu0 %v1637
          %1715 = vmatprep.subr.bf16.mxu0 0
          %1716 = vmatpush1.bf16.msra.mxu0 %v1638
          %1717 = vmatprep.subr.bf16.mxu0 0
          %1718 = vmatpush1.bf16.msra.mxu0 %v1639
          %1719 = vmatprep.subr.bf16.mxu0 0
          %1720 = vmatpush1.bf16.msra.mxu0 %v1640
          %1721 = vmatprep.mubr.bf16.mxu0 %v1430
          %1722 = vmatmul.mubr.bf16.gmra.mrb[0].mxu0 %v1429
          %v1723 = vpop.f32.mrb[0].mxu0
          %v1724 = vadd.f32 0.0, %v1723
          %v1725 = vpop.f32.mrb[0].mxu0
          %v1726 = vpop.f32.mrb[0].mxu0
          %v1727 = vpop.f32.mrb[0].mxu0
          %1728 = vdwg.mxu0
          %1729 = vmatprep.subr.bf16.mxu0 0
          %1730 = vmatpush1.bf16.msra.mxu0 %v1641
          %1731 = vmatprep.subr.bf16.mxu0 0
          %1732 = vmatpush1.bf16.msra.mxu0 %v1642
          %1733 = vmatprep.subr.bf16.mxu0 0
          %1734 = vmatpush1.bf16.msra.mxu0 %v1643
          %1735 = vmatprep.subr.bf16.mxu0 0
          %1736 = vmatpush1.bf16.msra.mxu0 %v1644
          %1737 = vmatprep.subr.bf16.mxu0 0
          %1738 = vmatpush1.bf16.msra.mxu0 %v1645
          %1739 = vmatprep.subr.bf16.mxu0 0
          %1740 = vmatpush1.bf16.msra.mxu0 %v1646
          %1741 = vmatprep.subr.bf16.mxu0 0
          %1742 = vmatpush1.bf16.msra.mxu0 %v1647
          %1743 = vmatprep.subr.bf16.mxu0 0
          %1744 = vmatpush1.bf16.msra.mxu0 %v1648
          %1745 = vmatprep.subr.bf16.mxu0 0
          %1746 = vmatpush1.bf16.msra.mxu0 %v1649
          %1747 = vmatprep.subr.bf16.mxu0 0
          %1748 = vmatpush1.bf16.msra.mxu0 %v1650
          %1749 = vmatprep.subr.bf16.mxu0 0
          %1750 = vmatpush1.bf16.msra.mxu0 %v1651
          %1751 = vmatprep.subr.bf16.mxu0 0
          %1752 = vmatpush1.bf16.msra.mxu0 %v1652
          %1753 = vmatprep.subr.bf16.mxu0 0
          %1754 = vmatpush1.bf16.msra.mxu0 %v1653
          %1755 = vmatprep.subr.bf16.mxu0 0
          %1756 = vmatpush1.bf16.msra.mxu0 %v1654
          %1757 = vmatprep.subr.bf16.mxu0 0
          %1758 = vmatpush1.bf16.msra.mxu0 %v1655
          %1759 = vmatprep.subr.bf16.mxu0 0
          %1760 = vmatpush1.bf16.msra.mxu0 %v1656
          %1761 = vmatprep.mubr.bf16.mxu0 %v1432
          %1762 = vmatmul.mubr.bf16.gmra.mrb[0].mxu0 %v1431
          %v1763 = vpop.f32.mrb[0].mxu0
          %v1764 = vadd.f32 %v1724, %v1763
          %v1765 = vpop.f32.mrb[0].mxu0
          %v1766 = vpop.f32.mrb[0].mxu0
          %v1767 = vpop.f32.mrb[0].mxu0
          %1768 = vdwg.mxu0
          %v1769 = vadd.f32 %v1406, %v1764
          %1770 = vst [vmem:[#allocation3] sm:$0x3] %v1769
        $region64: #{tpu_custom_call.1} parent=35 // pred_fallthru
          _
        %p1771 = scmp.eq.s32.totalorder %s31, 3
        %p1772 = pnand %p1771, %p367
        %p1773 = pneg %p1772
        // Predicated region
        $region65: #{tpu_custom_call.1} parent=35 // pred_check
          _
        $region66: #{tpu_custom_call.1} parent=35 // pred_check_branch
          %1775 = sbr.rel (%p1772) target = $region68
        $region67: #{tpu_custom_call.1} parent=35 // pred_region
          %v1776 = vld [vmem:[#allocation3] sm:$0x3]
          %1777 = vst [vmem:[%s353] sm:$0x3] %v1776
        $region68: #{tpu_custom_call.1} parent=35 // pred_fallthru
          _
        %s1778 = sand.u32 %s170, 1
        %s1779 = scalar_lea.sflag [#allocation6], %s1778
        %s1780 = sand.u32 %s170, 1
        %s1781 = smul.addr %s1780, 2
        %s1782 = scalar_lea.vmem [#allocation12], %s1781
        // Predicated region
        $region69: #{tpu_custom_call.1} parent=35 // pred_check
          %p1783 = pneg %p180
        $region70: #{tpu_custom_call.1} parent=35 // pred_check_branch
          %1785 = sbr.rel (%p1783) target = $region72
        $region71: #{tpu_custom_call.1} parent=35 // pred_region
          %s1787 = ssub.s32 32, 32
          %1788 = vsyncadd %s1779, %s1787
          %s1789 = smul.addr %s30, 32
          %s1790 = scalar_lea.hbm %s4, %s1789
          %s1792 = sshll.u32 %s1782, 4
          %s1793 = int_to_ptr.vmem [resolvable:$true] %s1792
          %1795 = dma.vmem_to_hbm [thread:$0]  %s1793, 32, %s1790, %s1779
        $region72: #{tpu_custom_call.1} parent=35 // pred_fallthru
          _
      $region36: #{tpu_custom_call.1} parent=5 // pred_fallthru
        _
      %p1796 = scmp.le.s32.totalorder 2, %s20
      // Predicated region
      $region73: #{tpu_custom_call.1} parent=5 // pred_check
        %p1797 = pneg %p1796
      $region74: #{tpu_custom_call.1} parent=5 // pred_check_branch
        %1799 = sbr.rel (%p1797) target = $region76
      $region75: #{tpu_custom_call.1} parent=5 // pred_region
        %s1800 = ssub.s32 %s20, 2
        // Predicated region
        $region77: #{tpu_custom_call.1} parent=75 // pred_check
          %p1801 = pneg %p186
        $region78: #{tpu_custom_call.1} parent=75 // pred_check_branch
          %1803 = sbr.rel (%p1801) target = $region80
        $region79: #{tpu_custom_call.1} parent=75 // pred_region
          %s1804 = sand.u32 %s171, 1
          %s1805 = scalar_lea.sflag [#allocation6], %s1804
          %s1806 = sand.u32 %s171, 1
          %s1807 = smul.addr %s1806, 2
          %s1808 = scalar_lea.vmem [#allocation12], %s1807
          %1809 = dma.done %s1805, 32
        $region80: #{tpu_custom_call.1} parent=75 // pred_fallthru
          _
      $region76: #{tpu_custom_call.1} parent=5 // pred_fallthru
        _
    $region6: #{tpu_custom_call.1} parent=1 // loop_footer
      %s24 = sadd.s32 1, %s20
    $region7: #{tpu_custom_call.1} parent=1 // loop_footer_branch
      %19 = sbr.rel target = $region3
    $region8: #{tpu_custom_call.1} parent=1 // loop_exit
      _
    %1810 = vsyncpa [#allocation5], 1
    %s1811 = scalar_lea.sflag [#allocation5], 1
    %1812 = vsyncpa %s1811, 1
    %1813 = vsyncpa [#allocation8], 1
    %s1814 = scalar_lea.sflag [#allocation8], 1
    %1815 = vsyncpa %s1814, 1
    %1816 = vsyncpa [#allocation11], 1
    %s1817 = scalar_lea.sflag [#allocation11], 1
    %1818 = vsyncpa %s1817, 1
    %1819 = vsyncpa [#allocation6], 1
    %s1820 = scalar_lea.sflag [#allocation6], 1
    %1821 = vsyncpa %s1820, 1

</llo_original>
